<compile_context>
chip_gen: v5e
topology: v5e:2x2
jax: 0.10.0
libtpu: 0.0.40
codegen_flags: <defaults>
</compile_context>

<pallas_src>
import math
from functools import partial

import jax
import jax.numpy as jnp
from jax import lax
from jax.experimental import pallas as pl
from jax.experimental.pallas import tpu as pltpu

# --- synthetic-small BERT config ---
VOCAB = 100
HIDDEN = 32
N_LAYERS = 2
N_HEADS = 4
HEAD_DIM = HIDDEN // N_HEADS
INTERMEDIATE = 64
MAX_POS = 16
TYPE_VOCAB = 2
N_CLASSES = 4
LN_EPS = 1e-12
ATTN_SCALE = 1.0 / math.sqrt(HEAD_DIM)
GELU_C = math.sqrt(2.0 / math.pi)


# ---------------- in-kernel helpers (traced inside the Pallas body) ----------------

def _layer_norm(x, g, b):
    mu = jnp.mean(x, axis=-1, keepdims=True)
    var = jnp.mean(jnp.square(x - mu), axis=-1, keepdims=True)
    return (x - mu) * lax.rsqrt(var + LN_EPS) * g + b


def _gelu(x):
    # tanh-approximation GELU (transcendental lands on the EUP)
    # TODO(synk): HF bert-base-uncased uses exact erf GELU; tanh approx kept for
    #             portability of the transcendental to the EUP.
    return 0.5 * x * (1.0 + jnp.tanh(GELU_C * (x + 0.044715 * x * x * x)))


def _softmax_last(x):
    x = x - jnp.max(x, axis=-1, keepdims=True)
    e = jnp.exp(x)
    return e / jnp.sum(e, axis=-1, keepdims=True)


# ---------------- the single fused kernel ----------------

def _bert_fused_kernel(
        x_ref, bias_ref, hmask_ref, clssel_ref, eg_ref, eb_ref,
        qw_ref, qb_ref, kw_ref, kb_ref, vw_ref, vb_ref,
        aow_ref, aob_ref, ln1g_ref, ln1b_ref,
        f1w_ref, f1b_ref, f2w_ref, f2b_ref, ln2g_ref, ln2b_ref,
        poolw_ref, poolb_ref, clsw_ref, clsb_ref,
        o_ref):
    f32 = jnp.float32

    # embeddings LayerNorm (residual/LN fused into the kernel)
    x = _layer_norm(x_ref[...], eg_ref[...], eb_ref[...])            # (T, H), T = B*S

    # combined additive bias: 0 keep / -1e9 for padded keys OR cross-sequence pairs
    bias = bias_ref[...]                                             # (T, T)

    # hoisted per-head column-selector masks, each (1, H)
    head_masks = [hmask_ref[h] for h in range(N_HEADS)]

    for l in range(N_LAYERS):
        # --- self attention: Q/K/V projections on the whole token slab ---
        q = jnp.dot(x, qw_ref[l], preferred_element_type=f32) + qb_ref[l]
        k = jnp.dot(x, kw_ref[l], preferred_element_type=f32) + kb_ref[l]
        v = jnp.dot(x, vw_ref[l], preferred_element_type=f32) + vb_ref[l]
        q = q * ATTN_SCALE

        # all heads, all sequences at once; head columns are selected with lane
        # masks (no sub-128 lane slicing / transposes), cross-sequence pairs
        # are killed by the block-diagonal -1e9 bias.
        ctx = jnp.zeros_like(x)                                       # (T, H)
        for h in range(N_HEADS):
            hm = head_masks[h]                                        # (1, H)
            # scores_h = q_h @ k_h^T : masked-out columns contribute 0 to the
            # 32-wide contraction, so this equals the per-head matmul.
            s = lax.dot_general(q * hm, k,
                                (((1,), (1,)), ((), ())),
                                preferred_element_type=f32)           # (T, T)
            p = _softmax_last(s + bias)
            # p_h @ v_h, landing directly in head-h columns via the v mask
            ctx = ctx + jnp.dot(p, v * hm, preferred_element_type=f32)

        attn_out = jnp.dot(ctx, aow_ref[l],
                           preferred_element_type=f32) + aob_ref[l]
        x = _layer_norm(x + attn_out, ln1g_ref[l], ln1b_ref[l])       # fused residual+LN

        # --- feed forward ---
        hmid = jnp.dot(x, f1w_ref[l], preferred_element_type=f32) + f1b_ref[l]
        hmid = _gelu(hmid)
        ff_out = jnp.dot(hmid, f2w_ref[l], preferred_element_type=f32) + f2b_ref[l]
        x = _layer_norm(x + ff_out, ln2g_ref[l], ln2b_ref[l])         # fused residual+LN

    # --- pooler ([CLS] row per sequence) + dropout(identity) + classifier + softmax ---
    # gather the B CLS rows with one selection matmul (no per-batch slices/stores)
    cls_rows = jnp.dot(clssel_ref[...], x, preferred_element_type=f32)        # (B, H)
    pooled = jnp.tanh(jnp.dot(cls_rows, poolw_ref[...],
                              preferred_element_type=f32) + poolb_ref[...])   # (B, H)
    logits = jnp.dot(pooled, clsw_ref[...],
                     preferred_element_type=f32) + clsb_ref[...]              # (B, 4)
    o_ref[...] = _softmax_last(logits).astype(o_ref.dtype)                    # single store


def _full_spec(shape):
    zeros = (0,) * len(shape)
    return pl.BlockSpec(shape, lambda i, _z=zeros: _z)


# ---------------- parameter init (deterministic, synthetic) ----------------

def init_params(key):
    std = 0.02

    def nrm(k, shape):
        return (std * jax.random.normal(k, shape)).astype(jnp.float32)

    keys = iter(jax.random.split(key, 8 + N_LAYERS * 8))
    params = {
        "word_emb": nrm(next(keys), (VOCAB, HIDDEN)),
        "pos_emb": nrm(next(keys), (MAX_POS, HIDDEN)),
        "type_emb": nrm(next(keys), (TYPE_VOCAB, HIDDEN)),
        "emb_ln_g": jnp.ones((HIDDEN,), jnp.float32),
        "emb_ln_b": jnp.zeros((HIDDEN,), jnp.float32),
        "pool_w": nrm(next(keys), (HIDDEN, HIDDEN)),
        "pool_b": jnp.zeros((HIDDEN,), jnp.float32),
        "cls_w": nrm(next(keys), (HIDDEN, N_CLASSES)),
        "cls_b": jnp.zeros((N_CLASSES,), jnp.float32),
        "layers": [],
    }
    for _ in range(N_LAYERS):
        layer = {
            "q_w": nrm(next(keys), (HIDDEN, HIDDEN)), "q_b": jnp.zeros((HIDDEN,), jnp.float32),
            "k_w": nrm(next(keys), (HIDDEN, HIDDEN)), "k_b": jnp.zeros((HIDDEN,), jnp.float32),
            "v_w": nrm(next(keys), (HIDDEN, HIDDEN)), "v_b": jnp.zeros((HIDDEN,), jnp.float32),
            "ao_w": nrm(next(keys), (HIDDEN, HIDDEN)), "ao_b": jnp.zeros((HIDDEN,), jnp.float32),
            "ln1_g": jnp.ones((HIDDEN,), jnp.float32), "ln1_b": jnp.zeros((HIDDEN,), jnp.float32),
            "ff_w1": nrm(next(keys), (HIDDEN, INTERMEDIATE)), "ff_b1": jnp.zeros((INTERMEDIATE,), jnp.float32),
            "ff_w2": nrm(next(keys), (INTERMEDIATE, HIDDEN)), "ff_b2": jnp.zeros((HIDDEN,), jnp.float32),
            "ln2_g": jnp.ones((HIDDEN,), jnp.float32), "ln2_b": jnp.zeros((HIDDEN,), jnp.float32),
        }
        params["layers"].append(layer)
    return params


# ---------------- forward pass: embedding gather in glue, everything else fused ----------------

def bert_model_forward(params, input_ids, mask):
    B, S = input_ids.shape
    T = B * S

    # embeddings: word + position + token-type(0) gather (glue, one XLA op)
    x_emb = (params["word_emb"][input_ids]
             + params["pos_emb"][jnp.arange(S)][None, :, :]
             + params["type_emb"][0][None, None, :]).astype(jnp.float32)
    x_emb = x_emb.reshape(T, HIDDEN)

    # combined additive attention bias hoisted out of the kernel:
    #   0 where (same sequence AND key not padded), -1e9 elsewhere
    batch_idx = jnp.repeat(jnp.arange(B), S)                         # (T,)
    same_seq = batch_idx[:, None] == batch_idx[None, :]              # (T, T)
    key_valid = mask.reshape(-1) > 0                                 # (T,)
    attn_bias = jnp.where(same_seq & key_valid[None, :], 0.0, -1e9).astype(jnp.float32)

    # per-head column-selector masks (N_HEADS, 1, HIDDEN)
    col = jnp.arange(HIDDEN)
    head_mask = jnp.stack(
        [((col >= h * HEAD_DIM) & (col < (h + 1) * HEAD_DIM))
         .astype(jnp.float32).reshape(1, HIDDEN) for h in range(N_HEADS)],
        axis=0)

    # [CLS]-row gather as a selection matmul: (B, T) with 1 at (b, b*S)
    cls_sel = jnp.zeros((B, T), jnp.float32).at[jnp.arange(B), jnp.arange(B) * S].set(1.0)

    layers = params["layers"]

    def stack_w(name):
        return jnp.stack([lyr[name] for lyr in layers], axis=0)

    def stack_v(name):  # biases / LN params -> (L, 1, dim)
        return jnp.stack([lyr[name].reshape(1, -1) for lyr in layers], axis=0)

    args = (
        x_emb, attn_bias, head_mask, cls_sel,
        params["emb_ln_g"].reshape(1, HIDDEN), params["emb_ln_b"].reshape(1, HIDDEN),
        stack_w("q_w"), stack_v("q_b"),
        stack_w("k_w"), stack_v("k_b"),
        stack_w("v_w"), stack_v("v_b"),
        stack_w("ao_w"), stack_v("ao_b"),
        stack_v("ln1_g"), stack_v("ln1_b"),
        stack_w("ff_w1"), stack_v("ff_b1"),
        stack_w("ff_w2"), stack_v("ff_b2"),
        stack_v("ln2_g"), stack_v("ln2_b"),
        params["pool_w"], params["pool_b"].reshape(1, HIDDEN),
        params["cls_w"], params["cls_b"].reshape(1, N_CLASSES),
    )

    return pl.pallas_call(
        _bert_fused_kernel,
        out_shape=jax.ShapeDtypeStruct((B, N_CLASSES), jnp.float32),
        grid=(1,),
        in_specs=[_full_spec(a.shape) for a in args],
        out_specs=_full_spec((B, N_CLASSES)),
        compiler_params=pltpu.CompilerParams(
            dimension_semantics=("arbitrary",)),
    )(*args)


if __name__ == "__main__":
    root = jax.random.PRNGKey(0)
    k_params, k_ids = jax.random.split(root)

    params = init_params(k_params)

    B, S = 2, 8
    input_ids = jax.random.randint(k_ids, (B, S), 0, VOCAB, dtype=jnp.int32)
    mask = jnp.ones((B, S), dtype=jnp.int32).at[1, 6:].set(0)   # pad tail of 2nd sequence

    probs = jax.jit(bert_model_forward)(params, input_ids, mask)
    probs = jax.block_until_ready(probs)

    assert probs.shape == (B, N_CLASSES)
    assert bool(jnp.all(jnp.isfinite(probs)))
    assert bool(jnp.allclose(jnp.sum(probs, axis=1), 1.0, atol=1e-5))
    print("KERNEL_OK")
</pallas_src>

<mosaic_0001>
module attributes {stable_mosaic.version = 11 : i64} {
  func.func @_bert_fused_kernel(%arg0: i32, %arg1: memref<16x32xf32, #tpu.memory_space<vmem>>, %arg2: memref<16x16xf32, #tpu.memory_space<vmem>>, %arg3: memref<4x1x32xf32, #tpu.memory_space<vmem>>, %arg4: memref<2x16xf32, #tpu.memory_space<vmem>>, %arg5: memref<1x32xf32, #tpu.memory_space<vmem>>, %arg6: memref<1x32xf32, #tpu.memory_space<vmem>>, %arg7: memref<2x32x32xf32, #tpu.memory_space<vmem>>, %arg8: memref<2x1x32xf32, #tpu.memory_space<vmem>>, %arg9: memref<2x32x32xf32, #tpu.memory_space<vmem>>, %arg10: memref<2x1x32xf32, #tpu.memory_space<vmem>>, %arg11: memref<2x32x32xf32, #tpu.memory_space<vmem>>, %arg12: memref<2x1x32xf32, #tpu.memory_space<vmem>>, %arg13: memref<2x32x32xf32, #tpu.memory_space<vmem>>, %arg14: memref<2x1x32xf32, #tpu.memory_space<vmem>>, %arg15: memref<2x1x32xf32, #tpu.memory_space<vmem>>, %arg16: memref<2x1x32xf32, #tpu.memory_space<vmem>>, %arg17: memref<2x32x64xf32, #tpu.memory_space<vmem>>, %arg18: memref<2x1x64xf32, #tpu.memory_space<vmem>>, %arg19: memref<2x64x32xf32, #tpu.memory_space<vmem>>, %arg20: memref<2x1x32xf32, #tpu.memory_space<vmem>>, %arg21: memref<2x1x32xf32, #tpu.memory_space<vmem>>, %arg22: memref<2x1x32xf32, #tpu.memory_space<vmem>>, %arg23: memref<32x32xf32, #tpu.memory_space<vmem>>, %arg24: memref<1x32xf32, #tpu.memory_space<vmem>>, %arg25: memref<32x4xf32, #tpu.memory_space<vmem>>, %arg26: memref<1x4xf32, #tpu.memory_space<vmem>>, %arg27: memref<2x4xf32, #tpu.memory_space<vmem>>) attributes {dimension_semantics = [#tpu.dimension_semantics<arbitrary>], iteration_bounds = array<i64: 1>, scalar_prefetch = 0 : i64, scratch_operands = 0 : i64, tpu.core_type = #tpu.core_type<tc>, window_params = [{pipeline_mode = #tpu.pipeline_mode<synchronous>, transform_indices = @transform_0, window_bounds = array<i64: 16, 32>}, {pipeline_mode = #tpu.pipeline_mode<synchronous>, transform_indices = @transform_1, window_bounds = array<i64: 16, 16>}, {pipeline_mode = #tpu.pipeline_mode<synchronous>, transform_indices = @transform_2, window_bounds = array<i64: 4, 1, 32>}, {pipeline_mode = #tpu.pipeline_mode<synchronous>, transform_indices = @transform_3, window_bounds = array<i64: 2, 16>}, {pipeline_mode = #tpu.pipeline_mode<synchronous>, transform_indices = @transform_4, window_bounds = array<i64: 1, 32>}, {pipeline_mode = #tpu.pipeline_mode<synchronous>, transform_indices = @transform_5, window_bounds = array<i64: 1, 32>}, {pipeline_mode = #tpu.pipeline_mode<synchronous>, transform_indices = @transform_6, window_bounds = array<i64: 2, 32, 32>}, {pipeline_mode = #tpu.pipeline_mode<synchronous>, transform_indices = @transform_7, window_bounds = array<i64: 2, 1, 32>}, {pipeline_mode = #tpu.pipeline_mode<synchronous>, transform_indices = @transform_8, window_bounds = array<i64: 2, 32, 32>}, {pipeline_mode = #tpu.pipeline_mode<synchronous>, transform_indices = @transform_9, window_bounds = array<i64: 2, 1, 32>}, {pipeline_mode = #tpu.pipeline_mode<synchronous>, transform_indices = @transform_10, window_bounds = array<i64: 2, 32, 32>}, {pipeline_mode = #tpu.pipeline_mode<synchronous>, transform_indices = @transform_11, window_bounds = array<i64: 2, 1, 32>}, {pipeline_mode = #tpu.pipeline_mode<synchronous>, transform_indices = @transform_12, window_bounds = array<i64: 2, 32, 32>}, {pipeline_mode = #tpu.pipeline_mode<synchronous>, transform_indices = @transform_13, window_bounds = array<i64: 2, 1, 32>}, {pipeline_mode = #tpu.pipeline_mode<synchronous>, transform_indices = @transform_14, window_bounds = array<i64: 2, 1, 32>}, {pipeline_mode = #tpu.pipeline_mode<synchronous>, transform_indices = @transform_15, window_bounds = array<i64: 2, 1, 32>}, {pipeline_mode = #tpu.pipeline_mode<synchronous>, transform_indices = @transform_16, window_bounds = array<i64: 2, 32, 64>}, {pipeline_mode = #tpu.pipeline_mode<synchronous>, transform_indices = @transform_17, window_bounds = array<i64: 2, 1, 64>}, {pipeline_mode = #tpu.pipeline_mode<synchronous>, transform_indices = @transform_18, window_bounds = array<i64: 2, 64, 32>}, {pipeline_mode = #tpu.pipeline_mode<synchronous>, transform_indices = @transform_19, window_bounds = array<i64: 2, 1, 32>}, {pipeline_mode = #tpu.pipeline_mode<synchronous>, transform_indices = @transform_20, window_bounds = array<i64: 2, 1, 32>}, {pipeline_mode = #tpu.pipeline_mode<synchronous>, transform_indices = @transform_21, window_bounds = array<i64: 2, 1, 32>}, {pipeline_mode = #tpu.pipeline_mode<synchronous>, transform_indices = @transform_22, window_bounds = array<i64: 32, 32>}, {pipeline_mode = #tpu.pipeline_mode<synchronous>, transform_indices = @transform_23, window_bounds = array<i64: 1, 32>}, {pipeline_mode = #tpu.pipeline_mode<synchronous>, transform_indices = @transform_24, window_bounds = array<i64: 32, 4>}, {pipeline_mode = #tpu.pipeline_mode<synchronous>, transform_indices = @transform_25, window_bounds = array<i64: 1, 4>}, {pipeline_mode = #tpu.pipeline_mode<synchronous>, transform_indices = @transform_26, window_bounds = array<i64: 2, 4>}]} {
    %c0 = arith.constant 0 : index
    %c0_0 = arith.constant 0 : index
    %0 = vector.load %arg1[%c0, %c0_0] : memref<16x32xf32, #tpu.memory_space<vmem>>, vector<16x32xf32>
    %c0_1 = arith.constant 0 : index
    %c0_2 = arith.constant 0 : index
    %1 = vector.load %arg5[%c0_1, %c0_2] : memref<1x32xf32, #tpu.memory_space<vmem>>, vector<1x32xf32>
    %c0_3 = arith.constant 0 : index
    %c0_4 = arith.constant 0 : index
    %2 = vector.load %arg6[%c0_3, %c0_4] : memref<1x32xf32, #tpu.memory_space<vmem>>, vector<1x32xf32>
    %cst = arith.constant dense<0.000000e+00> : vector<16xf32>
    %3 = vector.multi_reduction <add>, %0, %cst [1] : vector<16x32xf32> to vector<16xf32>
    %4 = vector.shape_cast %3 : vector<16xf32> to vector<16x1xf32>
    %cst_5 = arith.constant 3.200000e+01 : f32
    %5 = vector.broadcast %cst_5 : f32 to vector<16x1xf32>
    %6 = arith.divf %4, %5 : vector<16x1xf32>
    %7 = vector.broadcast %6 : vector<16x1xf32> to vector<16x32xf32>
    %8 = arith.subf %0, %7 : vector<16x32xf32>
    %9 = arith.mulf %8, %8 : vector<16x32xf32>
    %cst_6 = arith.constant dense<0.000000e+00> : vector<16xf32>
    %10 = vector.multi_reduction <add>, %9, %cst_6 [1] : vector<16x32xf32> to vector<16xf32>
    %11 = vector.shape_cast %10 : vector<16xf32> to vector<16x1xf32>
    %cst_7 = arith.constant 3.200000e+01 : f32
    %12 = vector.broadcast %cst_7 : f32 to vector<16x1xf32>
    %13 = arith.divf %11, %12 : vector<16x1xf32>
    %14 = vector.broadcast %6 : vector<16x1xf32> to vector<16x32xf32>
    %15 = arith.subf %0, %14 : vector<16x32xf32>
    %cst_8 = arith.constant 9.99999996E-13 : f32
    %16 = vector.broadcast %cst_8 : f32 to vector<16x1xf32>
    %17 = arith.addf %13, %16 : vector<16x1xf32>
    %18 = math.rsqrt %17 : vector<16x1xf32>
    %19 = vector.broadcast %18 : vector<16x1xf32> to vector<16x32xf32>
    %20 = arith.mulf %15, %19 : vector<16x32xf32>
    %21 = vector.broadcast %1 : vector<1x32xf32> to vector<16x32xf32>
    %22 = arith.mulf %20, %21 : vector<16x32xf32>
    %23 = vector.broadcast %2 : vector<1x32xf32> to vector<16x32xf32>
    %24 = arith.addf %22, %23 : vector<16x32xf32>
    %c0_9 = arith.constant 0 : index
    %c0_10 = arith.constant 0 : index
    %25 = vector.load %arg2[%c0_9, %c0_10] : memref<16x16xf32, #tpu.memory_space<vmem>>, vector<16x16xf32>
    %c0_11 = arith.constant 0 : index
    %c0_12 = arith.constant 0 : index
    %c0_13 = arith.constant 0 : index
    %26 = vector.load %arg3[%c0_11, %c0_12, %c0_13] : memref<4x1x32xf32, #tpu.memory_space<vmem>>, vector<1x1x32xf32>
    %27 = vector.shape_cast %26 : vector<1x1x32xf32> to vector<1x32xf32>
    %c1 = arith.constant 1 : index
    %c0_14 = arith.constant 0 : index
    %c0_15 = arith.constant 0 : index
    %28 = vector.load %arg3[%c1, %c0_14, %c0_15] : memref<4x1x32xf32, #tpu.memory_space<vmem>>, vector<1x1x32xf32>
    %29 = vector.shape_cast %28 : vector<1x1x32xf32> to vector<1x32xf32>
    %c2 = arith.constant 2 : index
    %c0_16 = arith.constant 0 : index
    %c0_17 = arith.constant 0 : index
    %30 = vector.load %arg3[%c2, %c0_16, %c0_17] : memref<4x1x32xf32, #tpu.memory_space<vmem>>, vector<1x1x32xf32>
    %31 = vector.shape_cast %30 : vector<1x1x32xf32> to vector<1x32xf32>
    %c3 = arith.constant 3 : index
    %c0_18 = arith.constant 0 : index
    %c0_19 = arith.constant 0 : index
    %32 = vector.load %arg3[%c3, %c0_18, %c0_19] : memref<4x1x32xf32, #tpu.memory_space<vmem>>, vector<1x1x32xf32>
    %33 = vector.shape_cast %32 : vector<1x1x32xf32> to vector<1x32xf32>
    %c0_20 = arith.constant 0 : index
    %c0_21 = arith.constant 0 : index
    %c0_22 = arith.constant 0 : index
    %34 = vector.load %arg7[%c0_20, %c0_21, %c0_22] : memref<2x32x32xf32, #tpu.memory_space<vmem>>, vector<1x32x32xf32>
    %35 = vector.shape_cast %34 : vector<1x32x32xf32> to vector<32x32xf32>
    %cst_23 = arith.constant dense<0.000000e+00> : vector<16x32xf32>
    %36 = tpu.matmul %24, %35, %cst_23 {dimension_numbers = #tpu.dot_dimension_numbers<[1], [0], [0], [1], [0, 0, 1, 1], [], []>} : vector<16x32xf32>, vector<32x32xf32>, vector<16x32xf32> -> vector<16x32xf32>
    %c0_24 = arith.constant 0 : index
    %c0_25 = arith.constant 0 : index
    %c0_26 = arith.constant 0 : index
    %37 = vector.load %arg8[%c0_24, %c0_25, %c0_26] : memref<2x1x32xf32, #tpu.memory_space<vmem>>, vector<1x1x32xf32>
    %38 = vector.shape_cast %37 : vector<1x1x32xf32> to vector<1x32xf32>
    %39 = vector.broadcast %38 : vector<1x32xf32> to vector<16x32xf32>
    %40 = arith.addf %36, %39 : vector<16x32xf32>
    %c0_27 = arith.constant 0 : index
    %c0_28 = arith.constant 0 : index
    %c0_29 = arith.constant 0 : index
    %41 = vector.load %arg9[%c0_27, %c0_28, %c0_29] : memref<2x32x32xf32, #tpu.memory_space<vmem>>, vector<1x32x32xf32>
    %42 = vector.shape_cast %41 : vector<1x32x32xf32> to vector<32x32xf32>
    %cst_30 = arith.constant dense<0.000000e+00> : vector<16x32xf32>
    %43 = tpu.matmul %24, %42, %cst_30 {dimension_numbers = #tpu.dot_dimension_numbers<[1], [0], [0], [1], [0, 0, 1, 1], [], []>} : vector<16x32xf32>, vector<32x32xf32>, vector<16x32xf32> -> vector<16x32xf32>
    %c0_31 = arith.constant 0 : index
    %c0_32 = arith.constant 0 : index
    %c0_33 = arith.constant 0 : index
    %44 = vector.load %arg10[%c0_31, %c0_32, %c0_33] : memref<2x1x32xf32, #tpu.memory_space<vmem>>, vector<1x1x32xf32>
    %45 = vector.shape_cast %44 : vector<1x1x32xf32> to vector<1x32xf32>
    %46 = vector.broadcast %45 : vector<1x32xf32> to vector<16x32xf32>
    %47 = arith.addf %43, %46 : vector<16x32xf32>
    %c0_34 = arith.constant 0 : index
    %c0_35 = arith.constant 0 : index
    %c0_36 = arith.constant 0 : index
    %48 = vector.load %arg11[%c0_34, %c0_35, %c0_36] : memref<2x32x32xf32, #tpu.memory_space<vmem>>, vector<1x32x32xf32>
    %49 = vector.shape_cast %48 : vector<1x32x32xf32> to vector<32x32xf32>
    %cst_37 = arith.constant dense<0.000000e+00> : vector<16x32xf32>
    %50 = tpu.matmul %24, %49, %cst_37 {dimension_numbers = #tpu.dot_dimension_numbers<[1], [0], [0], [1], [0, 0, 1, 1], [], []>} : vector<16x32xf32>, vector<32x32xf32>, vector<16x32xf32> -> vector<16x32xf32>
    %c0_38 = arith.constant 0 : index
    %c0_39 = arith.constant 0 : index
    %c0_40 = arith.constant 0 : index
    %51 = vector.load %arg12[%c0_38, %c0_39, %c0_40] : memref<2x1x32xf32, #tpu.memory_space<vmem>>, vector<1x1x32xf32>
    %52 = vector.shape_cast %51 : vector<1x1x32xf32> to vector<1x32xf32>
    %53 = vector.broadcast %52 : vector<1x32xf32> to vector<16x32xf32>
    %54 = arith.addf %50, %53 : vector<16x32xf32>
    %cst_41 = arith.constant 0.353553385 : f32
    %55 = vector.broadcast %cst_41 : f32 to vector<16x32xf32>
    %56 = arith.mulf %40, %55 : vector<16x32xf32>
    %cst_42 = arith.constant 0.000000e+00 : f32
    %57 = vector.broadcast %cst_42 : f32 to vector<16x32xf32>
    %58 = vector.broadcast %27 : vector<1x32xf32> to vector<16x32xf32>
    %59 = arith.mulf %56, %58 : vector<16x32xf32>
    %cst_43 = arith.constant dense<0.000000e+00> : vector<16x16xf32>
    %60 = tpu.matmul %59, %47, %cst_43 {dimension_numbers = #tpu.dot_dimension_numbers<[1], [1], [0], [0], [0, 0, 1, 0], [], []>} : vector<16x32xf32>, vector<16x32xf32>, vector<16x16xf32> -> vector<16x16xf32>
    %61 = arith.addf %60, %25 : vector<16x16xf32>
    %cst_44 = arith.constant dense<0xFF800000> : vector<16xf32>
    %62 = vector.multi_reduction <maximumf>, %61, %cst_44 [1] : vector<16x16xf32> to vector<16xf32>
    %63 = vector.shape_cast %62 : vector<16xf32> to vector<16x1xf32>
    %64 = vector.broadcast %63 : vector<16x1xf32> to vector<16x16xf32>
    %65 = arith.subf %61, %64 : vector<16x16xf32>
    %66 = math.exp %65 : vector<16x16xf32>
    %cst_45 = arith.constant dense<0.000000e+00> : vector<16xf32>
    %67 = vector.multi_reduction <add>, %66, %cst_45 [1] : vector<16x16xf32> to vector<16xf32>
    %68 = vector.shape_cast %67 : vector<16xf32> to vector<16x1xf32>
    %69 = vector.broadcast %68 : vector<16x1xf32> to vector<16x16xf32>
    %70 = arith.divf %66, %69 : vector<16x16xf32>
    %71 = vector.broadcast %27 : vector<1x32xf32> to vector<16x32xf32>
    %72 = arith.mulf %54, %71 : vector<16x32xf32>
    %cst_46 = arith.constant dense<0.000000e+00> : vector<16x32xf32>
    %73 = tpu.matmul %70, %72, %cst_46 {dimension_numbers = #tpu.dot_dimension_numbers<[1], [0], [0], [1], [0, 0, 1, 1], [], []>} : vector<16x16xf32>, vector<16x32xf32>, vector<16x32xf32> -> vector<16x32xf32>
    %74 = arith.addf %57, %73 : vector<16x32xf32>
    %75 = vector.broadcast %29 : vector<1x32xf32> to vector<16x32xf32>
    %76 = arith.mulf %56, %75 : vector<16x32xf32>
    %cst_47 = arith.constant dense<0.000000e+00> : vector<16x16xf32>
    %77 = tpu.matmul %76, %47, %cst_47 {dimension_numbers = #tpu.dot_dimension_numbers<[1], [1], [0], [0], [0, 0, 1, 0], [], []>} : vector<16x32xf32>, vector<16x32xf32>, vector<16x16xf32> -> vector<16x16xf32>
    %78 = arith.addf %77, %25 : vector<16x16xf32>
    %cst_48 = arith.constant dense<0xFF800000> : vector<16xf32>
    %79 = vector.multi_reduction <maximumf>, %78, %cst_48 [1] : vector<16x16xf32> to vector<16xf32>
    %80 = vector.shape_cast %79 : vector<16xf32> to vector<16x1xf32>
    %81 = vector.broadcast %80 : vector<16x1xf32> to vector<16x16xf32>
    %82 = arith.subf %78, %81 : vector<16x16xf32>
    %83 = math.exp %82 : vector<16x16xf32>
    %cst_49 = arith.constant dense<0.000000e+00> : vector<16xf32>
    %84 = vector.multi_reduction <add>, %83, %cst_49 [1] : vector<16x16xf32> to vector<16xf32>
    %85 = vector.shape_cast %84 : vector<16xf32> to vector<16x1xf32>
    %86 = vector.broadcast %85 : vector<16x1xf32> to vector<16x16xf32>
    %87 = arith.divf %83, %86 : vector<16x16xf32>
    %88 = vector.broadcast %29 : vector<1x32xf32> to vector<16x32xf32>
    %89 = arith.mulf %54, %88 : vector<16x32xf32>
    %cst_50 = arith.constant dense<0.000000e+00> : vector<16x32xf32>
    %90 = tpu.matmul %87, %89, %cst_50 {dimension_numbers = #tpu.dot_dimension_numbers<[1], [0], [0], [1], [0, 0, 1, 1], [], []>} : vector<16x16xf32>, vector<16x32xf32>, vector<16x32xf32> -> vector<16x32xf32>
    %91 = arith.addf %74, %90 : vector<16x32xf32>
    %92 = vector.broadcast %31 : vector<1x32xf32> to vector<16x32xf32>
    %93 = arith.mulf %56, %92 : vector<16x32xf32>
    %cst_51 = arith.constant dense<0.000000e+00> : vector<16x16xf32>
    %94 = tpu.matmul %93, %47, %cst_51 {dimension_numbers = #tpu.dot_dimension_numbers<[1], [1], [0], [0], [0, 0, 1, 0], [], []>} : vector<16x32xf32>, vector<16x32xf32>, vector<16x16xf32> -> vector<16x16xf32>
    %95 = arith.addf %94, %25 : vector<16x16xf32>
    %cst_52 = arith.constant dense<0xFF800000> : vector<16xf32>
    %96 = vector.multi_reduction <maximumf>, %95, %cst_52 [1] : vector<16x16xf32> to vector<16xf32>
    %97 = vector.shape_cast %96 : vector<16xf32> to vector<16x1xf32>
    %98 = vector.broadcast %97 : vector<16x1xf32> to vector<16x16xf32>
    %99 = arith.subf %95, %98 : vector<16x16xf32>
    %100 = math.exp %99 : vector<16x16xf32>
    %cst_53 = arith.constant dense<0.000000e+00> : vector<16xf32>
    %101 = vector.multi_reduction <add>, %100, %cst_53 [1] : vector<16x16xf32> to vector<16xf32>
    %102 = vector.shape_cast %101 : vector<16xf32> to vector<16x1xf32>
    %103 = vector.broadcast %102 : vector<16x1xf32> to vector<16x16xf32>
    %104 = arith.divf %100, %103 : vector<16x16xf32>
    %105 = vector.broadcast %31 : vector<1x32xf32> to vector<16x32xf32>
    %106 = arith.mulf %54, %105 : vector<16x32xf32>
    %cst_54 = arith.constant dense<0.000000e+00> : vector<16x32xf32>
    %107 = tpu.matmul %104, %106, %cst_54 {dimension_numbers = #tpu.dot_dimension_numbers<[1], [0], [0], [1], [0, 0, 1, 1], [], []>} : vector<16x16xf32>, vector<16x32xf32>, vector<16x32xf32> -> vector<16x32xf32>
    %108 = arith.addf %91, %107 : vector<16x32xf32>
    %109 = vector.broadcast %33 : vector<1x32xf32> to vector<16x32xf32>
    %110 = arith.mulf %56, %109 : vector<16x32xf32>
    %cst_55 = arith.constant dense<0.000000e+00> : vector<16x16xf32>
    %111 = tpu.matmul %110, %47, %cst_55 {dimension_numbers = #tpu.dot_dimension_numbers<[1], [1], [0], [0], [0, 0, 1, 0], [], []>} : vector<16x32xf32>, vector<16x32xf32>, vector<16x16xf32> -> vector<16x16xf32>
    %112 = arith.addf %111, %25 : vector<16x16xf32>
    %cst_56 = arith.constant dense<0xFF800000> : vector<16xf32>
    %113 = vector.multi_reduction <maximumf>, %112, %cst_56 [1] : vector<16x16xf32> to vector<16xf32>
    %114 = vector.shape_cast %113 : vector<16xf32> to vector<16x1xf32>
    %115 = vector.broadcast %114 : vector<16x1xf32> to vector<16x16xf32>
    %116 = arith.subf %112, %115 : vector<16x16xf32>
    %117 = math.exp %116 : vector<16x16xf32>
    %cst_57 = arith.constant dense<0.000000e+00> : vector<16xf32>
    %118 = vector.multi_reduction <add>, %117, %cst_57 [1] : vector<16x16xf32> to vector<16xf32>
    %119 = vector.shape_cast %118 : vector<16xf32> to vector<16x1xf32>
    %120 = vector.broadcast %119 : vector<16x1xf32> to vector<16x16xf32>
    %121 = arith.divf %117, %120 : vector<16x16xf32>
    %122 = vector.broadcast %33 : vector<1x32xf32> to vector<16x32xf32>
    %123 = arith.mulf %54, %122 : vector<16x32xf32>
    %cst_58 = arith.constant dense<0.000000e+00> : vector<16x32xf32>
    %124 = tpu.matmul %121, %123, %cst_58 {dimension_numbers = #tpu.dot_dimension_numbers<[1], [0], [0], [1], [0, 0, 1, 1], [], []>} : vector<16x16xf32>, vector<16x32xf32>, vector<16x32xf32> -> vector<16x32xf32>
    %125 = arith.addf %108, %124 : vector<16x32xf32>
    %c0_59 = arith.constant 0 : index
    %c0_60 = arith.constant 0 : index
    %c0_61 = arith.constant 0 : index
    %126 = vector.load %arg13[%c0_59, %c0_60, %c0_61] : memref<2x32x32xf32, #tpu.memory_space<vmem>>, vector<1x32x32xf32>
    %127 = vector.shape_cast %126 : vector<1x32x32xf32> to vector<32x32xf32>
    %cst_62 = arith.constant dense<0.000000e+00> : vector<16x32xf32>
    %128 = tpu.matmul %125, %127, %cst_62 {dimension_numbers = #tpu.dot_dimension_numbers<[1], [0], [0], [1], [0, 0, 1, 1], [], []>} : vector<16x32xf32>, vector<32x32xf32>, vector<16x32xf32> -> vector<16x32xf32>
    %c0_63 = arith.constant 0 : index
    %c0_64 = arith.constant 0 : index
    %c0_65 = arith.constant 0 : index
    %129 = vector.load %arg14[%c0_63, %c0_64, %c0_65] : memref<2x1x32xf32, #tpu.memory_space<vmem>>, vector<1x1x32xf32>
    %130 = vector.shape_cast %129 : vector<1x1x32xf32> to vector<1x32xf32>
    %131 = vector.broadcast %130 : vector<1x32xf32> to vector<16x32xf32>
    %132 = arith.addf %128, %131 : vector<16x32xf32>
    %133 = arith.addf %24, %132 : vector<16x32xf32>
    %c0_66 = arith.constant 0 : index
    %c0_67 = arith.constant 0 : index
    %c0_68 = arith.constant 0 : index
    %134 = vector.load %arg15[%c0_66, %c0_67, %c0_68] : memref<2x1x32xf32, #tpu.memory_space<vmem>>, vector<1x1x32xf32>
    %135 = vector.shape_cast %134 : vector<1x1x32xf32> to vector<1x32xf32>
    %c0_69 = arith.constant 0 : index
    %c0_70 = arith.constant 0 : index
    %c0_71 = arith.constant 0 : index
    %136 = vector.load %arg16[%c0_69, %c0_70, %c0_71] : memref<2x1x32xf32, #tpu.memory_space<vmem>>, vector<1x1x32xf32>
    %137 = vector.shape_cast %136 : vector<1x1x32xf32> to vector<1x32xf32>
    %cst_72 = arith.constant dense<0.000000e+00> : vector<16xf32>
    %138 = vector.multi_reduction <add>, %133, %cst_72 [1] : vector<16x32xf32> to vector<16xf32>
    %139 = vector.shape_cast %138 : vector<16xf32> to vector<16x1xf32>
    %cst_73 = arith.constant 3.200000e+01 : f32
    %140 = vector.broadcast %cst_73 : f32 to vector<16x1xf32>
    %141 = arith.divf %139, %140 : vector<16x1xf32>
    %142 = vector.broadcast %141 : vector<16x1xf32> to vector<16x32xf32>
    %143 = arith.subf %133, %142 : vector<16x32xf32>
    %144 = arith.mulf %143, %143 : vector<16x32xf32>
    %cst_74 = arith.constant dense<0.000000e+00> : vector<16xf32>
    %145 = vector.multi_reduction <add>, %144, %cst_74 [1] : vector<16x32xf32> to vector<16xf32>
    %146 = vector.shape_cast %145 : vector<16xf32> to vector<16x1xf32>
    %cst_75 = arith.constant 3.200000e+01 : f32
    %147 = vector.broadcast %cst_75 : f32 to vector<16x1xf32>
    %148 = arith.divf %146, %147 : vector<16x1xf32>
    %149 = vector.broadcast %141 : vector<16x1xf32> to vector<16x32xf32>
    %150 = arith.subf %133, %149 : vector<16x32xf32>
    %cst_76 = arith.constant 9.99999996E-13 : f32
    %151 = vector.broadcast %cst_76 : f32 to vector<16x1xf32>
    %152 = arith.addf %148, %151 : vector<16x1xf32>
    %153 = math.rsqrt %152 : vector<16x1xf32>
    %154 = vector.broadcast %153 : vector<16x1xf32> to vector<16x32xf32>
    %155 = arith.mulf %150, %154 : vector<16x32xf32>
    %156 = vector.broadcast %135 : vector<1x32xf32> to vector<16x32xf32>
    %157 = arith.mulf %155, %156 : vector<16x32xf32>
    %158 = vector.broadcast %137 : vector<1x32xf32> to vector<16x32xf32>
    %159 = arith.addf %157, %158 : vector<16x32xf32>
    %c0_77 = arith.constant 0 : index
    %c0_78 = arith.constant 0 : index
    %c0_79 = arith.constant 0 : index
    %160 = vector.load %arg17[%c0_77, %c0_78, %c0_79] : memref<2x32x64xf32, #tpu.memory_space<vmem>>, vector<1x32x64xf32>
    %161 = vector.shape_cast %160 : vector<1x32x64xf32> to vector<32x64xf32>
    %cst_80 = arith.constant dense<0.000000e+00> : vector<16x64xf32>
    %162 = tpu.matmul %159, %161, %cst_80 {dimension_numbers = #tpu.dot_dimension_numbers<[1], [0], [0], [1], [0, 0, 1, 1], [], []>} : vector<16x32xf32>, vector<32x64xf32>, vector<16x64xf32> -> vector<16x64xf32>
    %c0_81 = arith.constant 0 : index
    %c0_82 = arith.constant 0 : index
    %c0_83 = arith.constant 0 : index
    %163 = vector.load %arg18[%c0_81, %c0_82, %c0_83] : memref<2x1x64xf32, #tpu.memory_space<vmem>>, vector<1x1x64xf32>
    %164 = vector.shape_cast %163 : vector<1x1x64xf32> to vector<1x64xf32>
    %165 = vector.broadcast %164 : vector<1x64xf32> to vector<16x64xf32>
    %166 = arith.addf %162, %165 : vector<16x64xf32>
    %cst_84 = arith.constant 5.000000e-01 : f32
    %167 = vector.broadcast %cst_84 : f32 to vector<16x64xf32>
    %168 = arith.mulf %167, %166 : vector<16x64xf32>
    %cst_85 = arith.constant 4.471500e-02 : f32
    %169 = vector.broadcast %cst_85 : f32 to vector<16x64xf32>
    %170 = arith.mulf %169, %166 : vector<16x64xf32>
    %171 = arith.mulf %170, %166 : vector<16x64xf32>
    %172 = arith.mulf %171, %166 : vector<16x64xf32>
    %173 = arith.addf %166, %172 : vector<16x64xf32>
    %cst_86 = arith.constant 0.797884583 : f32
    %174 = vector.broadcast %cst_86 : f32 to vector<16x64xf32>
    %175 = arith.mulf %174, %173 : vector<16x64xf32>
    %176 = math.tanh %175 : vector<16x64xf32>
    %cst_87 = arith.constant 1.000000e+00 : f32
    %177 = vector.broadcast %cst_87 : f32 to vector<16x64xf32>
    %178 = arith.addf %177, %176 : vector<16x64xf32>
    %179 = arith.mulf %168, %178 : vector<16x64xf32>
    %c0_88 = arith.constant 0 : index
    %c0_89 = arith.constant 0 : index
    %c0_90 = arith.constant 0 : index
    %180 = vector.load %arg19[%c0_88, %c0_89, %c0_90] : memref<2x64x32xf32, #tpu.memory_space<vmem>>, vector<1x64x32xf32>
    %181 = vector.shape_cast %180 : vector<1x64x32xf32> to vector<64x32xf32>
    %cst_91 = arith.constant dense<0.000000e+00> : vector<16x32xf32>
    %182 = tpu.matmul %179, %181, %cst_91 {dimension_numbers = #tpu.dot_dimension_numbers<[1], [0], [0], [1], [0, 0, 1, 1], [], []>} : vector<16x64xf32>, vector<64x32xf32>, vector<16x32xf32> -> vector<16x32xf32>
    %c0_92 = arith.constant 0 : index
    %c0_93 = arith.constant 0 : index
    %c0_94 = arith.constant 0 : index
    %183 = vector.load %arg20[%c0_92, %c0_93, %c0_94] : memref<2x1x32xf32, #tpu.memory_space<vmem>>, vector<1x1x32xf32>
    %184 = vector.shape_cast %183 : vector<1x1x32xf32> to vector<1x32xf32>
    %185 = vector.broadcast %184 : vector<1x32xf32> to vector<16x32xf32>
    %186 = arith.addf %182, %185 : vector<16x32xf32>
    %187 = arith.addf %159, %186 : vector<16x32xf32>
    %c0_95 = arith.constant 0 : index
    %c0_96 = arith.constant 0 : index
    %c0_97 = arith.constant 0 : index
    %188 = vector.load %arg21[%c0_95, %c0_96, %c0_97] : memref<2x1x32xf32, #tpu.memory_space<vmem>>, vector<1x1x32xf32>
    %189 = vector.shape_cast %188 : vector<1x1x32xf32> to vector<1x32xf32>
    %c0_98 = arith.constant 0 : index
    %c0_99 = arith.constant 0 : index
    %c0_100 = arith.constant 0 : index
    %190 = vector.load %arg22[%c0_98, %c0_99, %c0_100] : memref<2x1x32xf32, #tpu.memory_space<vmem>>, vector<1x1x32xf32>
    %191 = vector.shape_cast %190 : vector<1x1x32xf32> to vector<1x32xf32>
    %cst_101 = arith.constant dense<0.000000e+00> : vector<16xf32>
    %192 = vector.multi_reduction <add>, %187, %cst_101 [1] : vector<16x32xf32> to vector<16xf32>
    %193 = vector.shape_cast %192 : vector<16xf32> to vector<16x1xf32>
    %cst_102 = arith.constant 3.200000e+01 : f32
    %194 = vector.broadcast %cst_102 : f32 to vector<16x1xf32>
    %195 = arith.divf %193, %194 : vector<16x1xf32>
    %196 = vector.broadcast %195 : vector<16x1xf32> to vector<16x32xf32>
    %197 = arith.subf %187, %196 : vector<16x32xf32>
    %198 = arith.mulf %197, %197 : vector<16x32xf32>
    %cst_103 = arith.constant dense<0.000000e+00> : vector<16xf32>
    %199 = vector.multi_reduction <add>, %198, %cst_103 [1] : vector<16x32xf32> to vector<16xf32>
    %200 = vector.shape_cast %199 : vector<16xf32> to vector<16x1xf32>
    %cst_104 = arith.constant 3.200000e+01 : f32
    %201 = vector.broadcast %cst_104 : f32 to vector<16x1xf32>
    %202 = arith.divf %200, %201 : vector<16x1xf32>
    %203 = vector.broadcast %195 : vector<16x1xf32> to vector<16x32xf32>
    %204 = arith.subf %187, %203 : vector<16x32xf32>
    %cst_105 = arith.constant 9.99999996E-13 : f32
    %205 = vector.broadcast %cst_105 : f32 to vector<16x1xf32>
    %206 = arith.addf %202, %205 : vector<16x1xf32>
    %207 = math.rsqrt %206 : vector<16x1xf32>
    %208 = vector.broadcast %207 : vector<16x1xf32> to vector<16x32xf32>
    %209 = arith.mulf %204, %208 : vector<16x32xf32>
    %210 = vector.broadcast %189 : vector<1x32xf32> to vector<16x32xf32>
    %211 = arith.mulf %209, %210 : vector<16x32xf32>
    %212 = vector.broadcast %191 : vector<1x32xf32> to vector<16x32xf32>
    %213 = arith.addf %211, %212 : vector<16x32xf32>
    %c1_106 = arith.constant 1 : index
    %c0_107 = arith.constant 0 : index
    %c0_108 = arith.constant 0 : index
    %214 = vector.load %arg7[%c1_106, %c0_107, %c0_108] : memref<2x32x32xf32, #tpu.memory_space<vmem>>, vector<1x32x32xf32>
    %215 = vector.shape_cast %214 : vector<1x32x32xf32> to vector<32x32xf32>
    %cst_109 = arith.constant dense<0.000000e+00> : vector<16x32xf32>
    %216 = tpu.matmul %213, %215, %cst_109 {dimension_numbers = #tpu.dot_dimension_numbers<[1], [0], [0], [1], [0, 0, 1, 1], [], []>} : vector<16x32xf32>, vector<32x32xf32>, vector<16x32xf32> -> vector<16x32xf32>
    %c1_110 = arith.constant 1 : index
    %c0_111 = arith.constant 0 : index
    %c0_112 = arith.constant 0 : index
    %217 = vector.load %arg8[%c1_110, %c0_111, %c0_112] : memref<2x1x32xf32, #tpu.memory_space<vmem>>, vector<1x1x32xf32>
    %218 = vector.shape_cast %217 : vector<1x1x32xf32> to vector<1x32xf32>
    %219 = vector.broadcast %218 : vector<1x32xf32> to vector<16x32xf32>
    %220 = arith.addf %216, %219 : vector<16x32xf32>
    %c1_113 = arith.constant 1 : index
    %c0_114 = arith.constant 0 : index
    %c0_115 = arith.constant 0 : index
    %221 = vector.load %arg9[%c1_113, %c0_114, %c0_115] : memref<2x32x32xf32, #tpu.memory_space<vmem>>, vector<1x32x32xf32>
    %222 = vector.shape_cast %221 : vector<1x32x32xf32> to vector<32x32xf32>
    %cst_116 = arith.constant dense<0.000000e+00> : vector<16x32xf32>
    %223 = tpu.matmul %213, %222, %cst_116 {dimension_numbers = #tpu.dot_dimension_numbers<[1], [0], [0], [1], [0, 0, 1, 1], [], []>} : vector<16x32xf32>, vector<32x32xf32>, vector<16x32xf32> -> vector<16x32xf32>
    %c1_117 = arith.constant 1 : index
    %c0_118 = arith.constant 0 : index
    %c0_119 = arith.constant 0 : index
    %224 = vector.load %arg10[%c1_117, %c0_118, %c0_119] : memref<2x1x32xf32, #tpu.memory_space<vmem>>, vector<1x1x32xf32>
    %225 = vector.shape_cast %224 : vector<1x1x32xf32> to vector<1x32xf32>
    %226 = vector.broadcast %225 : vector<1x32xf32> to vector<16x32xf32>
    %227 = arith.addf %223, %226 : vector<16x32xf32>
    %c1_120 = arith.constant 1 : index
    %c0_121 = arith.constant 0 : index
    %c0_122 = arith.constant 0 : index
    %228 = vector.load %arg11[%c1_120, %c0_121, %c0_122] : memref<2x32x32xf32, #tpu.memory_space<vmem>>, vector<1x32x32xf32>
    %229 = vector.shape_cast %228 : vector<1x32x32xf32> to vector<32x32xf32>
    %cst_123 = arith.constant dense<0.000000e+00> : vector<16x32xf32>
    %230 = tpu.matmul %213, %229, %cst_123 {dimension_numbers = #tpu.dot_dimension_numbers<[1], [0], [0], [1], [0, 0, 1, 1], [], []>} : vector<16x32xf32>, vector<32x32xf32>, vector<16x32xf32> -> vector<16x32xf32>
    %c1_124 = arith.constant 1 : index
    %c0_125 = arith.constant 0 : index
    %c0_126 = arith.constant 0 : index
    %231 = vector.load %arg12[%c1_124, %c0_125, %c0_126] : memref<2x1x32xf32, #tpu.memory_space<vmem>>, vector<1x1x32xf32>
    %232 = vector.shape_cast %231 : vector<1x1x32xf32> to vector<1x32xf32>
    %233 = vector.broadcast %232 : vector<1x32xf32> to vector<16x32xf32>
    %234 = arith.addf %230, %233 : vector<16x32xf32>
    %cst_127 = arith.constant 0.353553385 : f32
    %235 = vector.broadcast %cst_127 : f32 to vector<16x32xf32>
    %236 = arith.mulf %220, %235 : vector<16x32xf32>
    %cst_128 = arith.constant 0.000000e+00 : f32
    %237 = vector.broadcast %cst_128 : f32 to vector<16x32xf32>
    %238 = vector.broadcast %27 : vector<1x32xf32> to vector<16x32xf32>
    %239 = arith.mulf %236, %238 : vector<16x32xf32>
    %cst_129 = arith.constant dense<0.000000e+00> : vector<16x16xf32>
    %240 = tpu.matmul %239, %227, %cst_129 {dimension_numbers = #tpu.dot_dimension_numbers<[1], [1], [0], [0], [0, 0, 1, 0], [], []>} : vector<16x32xf32>, vector<16x32xf32>, vector<16x16xf32> -> vector<16x16xf32>
    %241 = arith.addf %240, %25 : vector<16x16xf32>
    %cst_130 = arith.constant dense<0xFF800000> : vector<16xf32>
    %242 = vector.multi_reduction <maximumf>, %241, %cst_130 [1] : vector<16x16xf32> to vector<16xf32>
    %243 = vector.shape_cast %242 : vector<16xf32> to vector<16x1xf32>
    %244 = vector.broadcast %243 : vector<16x1xf32> to vector<16x16xf32>
    %245 = arith.subf %241, %244 : vector<16x16xf32>
    %246 = math.exp %245 : vector<16x16xf32>
    %cst_131 = arith.constant dense<0.000000e+00> : vector<16xf32>
    %247 = vector.multi_reduction <add>, %246, %cst_131 [1] : vector<16x16xf32> to vector<16xf32>
    %248 = vector.shape_cast %247 : vector<16xf32> to vector<16x1xf32>
    %249 = vector.broadcast %248 : vector<16x1xf32> to vector<16x16xf32>
    %250 = arith.divf %246, %249 : vector<16x16xf32>
    %251 = vector.broadcast %27 : vector<1x32xf32> to vector<16x32xf32>
    %252 = arith.mulf %234, %251 : vector<16x32xf32>
    %cst_132 = arith.constant dense<0.000000e+00> : vector<16x32xf32>
    %253 = tpu.matmul %250, %252, %cst_132 {dimension_numbers = #tpu.dot_dimension_numbers<[1], [0], [0], [1], [0, 0, 1, 1], [], []>} : vector<16x16xf32>, vector<16x32xf32>, vector<16x32xf32> -> vector<16x32xf32>
    %254 = arith.addf %237, %253 : vector<16x32xf32>
    %255 = vector.broadcast %29 : vector<1x32xf32> to vector<16x32xf32>
    %256 = arith.mulf %236, %255 : vector<16x32xf32>
    %cst_133 = arith.constant dense<0.000000e+00> : vector<16x16xf32>
    %257 = tpu.matmul %256, %227, %cst_133 {dimension_numbers = #tpu.dot_dimension_numbers<[1], [1], [0], [0], [0, 0, 1, 0], [], []>} : vector<16x32xf32>, vector<16x32xf32>, vector<16x16xf32> -> vector<16x16xf32>
    %258 = arith.addf %257, %25 : vector<16x16xf32>
    %cst_134 = arith.constant dense<0xFF800000> : vector<16xf32>
    %259 = vector.multi_reduction <maximumf>, %258, %cst_134 [1] : vector<16x16xf32> to vector<16xf32>
    %260 = vector.shape_cast %259 : vector<16xf32> to vector<16x1xf32>
    %261 = vector.broadcast %260 : vector<16x1xf32> to vector<16x16xf32>
    %262 = arith.subf %258, %261 : vector<16x16xf32>
    %263 = math.exp %262 : vector<16x16xf32>
    %cst_135 = arith.constant dense<0.000000e+00> : vector<16xf32>
    %264 = vector.multi_reduction <add>, %263, %cst_135 [1] : vector<16x16xf32> to vector<16xf32>
    %265 = vector.shape_cast %264 : vector<16xf32> to vector<16x1xf32>
    %266 = vector.broadcast %265 : vector<16x1xf32> to vector<16x16xf32>
    %267 = arith.divf %263, %266 : vector<16x16xf32>
    %268 = vector.broadcast %29 : vector<1x32xf32> to vector<16x32xf32>
    %269 = arith.mulf %234, %268 : vector<16x32xf32>
    %cst_136 = arith.constant dense<0.000000e+00> : vector<16x32xf32>
    %270 = tpu.matmul %267, %269, %cst_136 {dimension_numbers = #tpu.dot_dimension_numbers<[1], [0], [0], [1], [0, 0, 1, 1], [], []>} : vector<16x16xf32>, vector<16x32xf32>, vector<16x32xf32> -> vector<16x32xf32>
    %271 = arith.addf %254, %270 : vector<16x32xf32>
    %272 = vector.broadcast %31 : vector<1x32xf32> to vector<16x32xf32>
    %273 = arith.mulf %236, %272 : vector<16x32xf32>
    %cst_137 = arith.constant dense<0.000000e+00> : vector<16x16xf32>
    %274 = tpu.matmul %273, %227, %cst_137 {dimension_numbers = #tpu.dot_dimension_numbers<[1], [1], [0], [0], [0, 0, 1, 0], [], []>} : vector<16x32xf32>, vector<16x32xf32>, vector<16x16xf32> -> vector<16x16xf32>
    %275 = arith.addf %274, %25 : vector<16x16xf32>
    %cst_138 = arith.constant dense<0xFF800000> : vector<16xf32>
    %276 = vector.multi_reduction <maximumf>, %275, %cst_138 [1] : vector<16x16xf32> to vector<16xf32>
    %277 = vector.shape_cast %276 : vector<16xf32> to vector<16x1xf32>
    %278 = vector.broadcast %277 : vector<16x1xf32> to vector<16x16xf32>
    %279 = arith.subf %275, %278 : vector<16x16xf32>
    %280 = math.exp %279 : vector<16x16xf32>
    %cst_139 = arith.constant dense<0.000000e+00> : vector<16xf32>
    %281 = vector.multi_reduction <add>, %280, %cst_139 [1] : vector<16x16xf32> to vector<16xf32>
    %282 = vector.shape_cast %281 : vector<16xf32> to vector<16x1xf32>
    %283 = vector.broadcast %282 : vector<16x1xf32> to vector<16x16xf32>
    %284 = arith.divf %280, %283 : vector<16x16xf32>
    %285 = vector.broadcast %31 : vector<1x32xf32> to vector<16x32xf32>
    %286 = arith.mulf %234, %285 : vector<16x32xf32>
    %cst_140 = arith.constant dense<0.000000e+00> : vector<16x32xf32>
    %287 = tpu.matmul %284, %286, %cst_140 {dimension_numbers = #tpu.dot_dimension_numbers<[1], [0], [0], [1], [0, 0, 1, 1], [], []>} : vector<16x16xf32>, vector<16x32xf32>, vector<16x32xf32> -> vector<16x32xf32>
    %288 = arith.addf %271, %287 : vector<16x32xf32>
    %289 = vector.broadcast %33 : vector<1x32xf32> to vector<16x32xf32>
    %290 = arith.mulf %236, %289 : vector<16x32xf32>
    %cst_141 = arith.constant dense<0.000000e+00> : vector<16x16xf32>
    %291 = tpu.matmul %290, %227, %cst_141 {dimension_numbers = #tpu.dot_dimension_numbers<[1], [1], [0], [0], [0, 0, 1, 0], [], []>} : vector<16x32xf32>, vector<16x32xf32>, vector<16x16xf32> -> vector<16x16xf32>
    %292 = arith.addf %291, %25 : vector<16x16xf32>
    %cst_142 = arith.constant dense<0xFF800000> : vector<16xf32>
    %293 = vector.multi_reduction <maximumf>, %292, %cst_142 [1] : vector<16x16xf32> to vector<16xf32>
    %294 = vector.shape_cast %293 : vector<16xf32> to vector<16x1xf32>
    %295 = vector.broadcast %294 : vector<16x1xf32> to vector<16x16xf32>
    %296 = arith.subf %292, %295 : vector<16x16xf32>
    %297 = math.exp %296 : vector<16x16xf32>
    %cst_143 = arith.constant dense<0.000000e+00> : vector<16xf32>
    %298 = vector.multi_reduction <add>, %297, %cst_143 [1] : vector<16x16xf32> to vector<16xf32>
    %299 = vector.shape_cast %298 : vector<16xf32> to vector<16x1xf32>
    %300 = vector.broadcast %299 : vector<16x1xf32> to vector<16x16xf32>
    %301 = arith.divf %297, %300 : vector<16x16xf32>
    %302 = vector.broadcast %33 : vector<1x32xf32> to vector<16x32xf32>
    %303 = arith.mulf %234, %302 : vector<16x32xf32>
    %cst_144 = arith.constant dense<0.000000e+00> : vector<16x32xf32>
    %304 = tpu.matmul %301, %303, %cst_144 {dimension_numbers = #tpu.dot_dimension_numbers<[1], [0], [0], [1], [0, 0, 1, 1], [], []>} : vector<16x16xf32>, vector<16x32xf32>, vector<16x32xf32> -> vector<16x32xf32>
    %305 = arith.addf %288, %304 : vector<16x32xf32>
    %c1_145 = arith.constant 1 : index
    %c0_146 = arith.constant 0 : index
    %c0_147 = arith.constant 0 : index
    %306 = vector.load %arg13[%c1_145, %c0_146, %c0_147] : memref<2x32x32xf32, #tpu.memory_space<vmem>>, vector<1x32x32xf32>
    %307 = vector.shape_cast %306 : vector<1x32x32xf32> to vector<32x32xf32>
    %cst_148 = arith.constant dense<0.000000e+00> : vector<16x32xf32>
    %308 = tpu.matmul %305, %307, %cst_148 {dimension_numbers = #tpu.dot_dimension_numbers<[1], [0], [0], [1], [0, 0, 1, 1], [], []>} : vector<16x32xf32>, vector<32x32xf32>, vector<16x32xf32> -> vector<16x32xf32>
    %c1_149 = arith.constant 1 : index
    %c0_150 = arith.constant 0 : index
    %c0_151 = arith.constant 0 : index
    %309 = vector.load %arg14[%c1_149, %c0_150, %c0_151] : memref<2x1x32xf32, #tpu.memory_space<vmem>>, vector<1x1x32xf32>
    %310 = vector.shape_cast %309 : vector<1x1x32xf32> to vector<1x32xf32>
    %311 = vector.broadcast %310 : vector<1x32xf32> to vector<16x32xf32>
    %312 = arith.addf %308, %311 : vector<16x32xf32>
    %313 = arith.addf %213, %312 : vector<16x32xf32>
    %c1_152 = arith.constant 1 : index
    %c0_153 = arith.constant 0 : index
    %c0_154 = arith.constant 0 : index
    %314 = vector.load %arg15[%c1_152, %c0_153, %c0_154] : memref<2x1x32xf32, #tpu.memory_space<vmem>>, vector<1x1x32xf32>
    %315 = vector.shape_cast %314 : vector<1x1x32xf32> to vector<1x32xf32>
    %c1_155 = arith.constant 1 : index
    %c0_156 = arith.constant 0 : index
    %c0_157 = arith.constant 0 : index
    %316 = vector.load %arg16[%c1_155, %c0_156, %c0_157] : memref<2x1x32xf32, #tpu.memory_space<vmem>>, vector<1x1x32xf32>
    %317 = vector.shape_cast %316 : vector<1x1x32xf32> to vector<1x32xf32>
    %cst_158 = arith.constant dense<0.000000e+00> : vector<16xf32>
    %318 = vector.multi_reduction <add>, %313, %cst_158 [1] : vector<16x32xf32> to vector<16xf32>
    %319 = vector.shape_cast %318 : vector<16xf32> to vector<16x1xf32>
    %cst_159 = arith.constant 3.200000e+01 : f32
    %320 = vector.broadcast %cst_159 : f32 to vector<16x1xf32>
    %321 = arith.divf %319, %320 : vector<16x1xf32>
    %322 = vector.broadcast %321 : vector<16x1xf32> to vector<16x32xf32>
    %323 = arith.subf %313, %322 : vector<16x32xf32>
    %324 = arith.mulf %323, %323 : vector<16x32xf32>
    %cst_160 = arith.constant dense<0.000000e+00> : vector<16xf32>
    %325 = vector.multi_reduction <add>, %324, %cst_160 [1] : vector<16x32xf32> to vector<16xf32>
    %326 = vector.shape_cast %325 : vector<16xf32> to vector<16x1xf32>
    %cst_161 = arith.constant 3.200000e+01 : f32
    %327 = vector.broadcast %cst_161 : f32 to vector<16x1xf32>
    %328 = arith.divf %326, %327 : vector<16x1xf32>
    %329 = vector.broadcast %321 : vector<16x1xf32> to vector<16x32xf32>
    %330 = arith.subf %313, %329 : vector<16x32xf32>
    %cst_162 = arith.constant 9.99999996E-13 : f32
    %331 = vector.broadcast %cst_162 : f32 to vector<16x1xf32>
    %332 = arith.addf %328, %331 : vector<16x1xf32>
    %333 = math.rsqrt %332 : vector<16x1xf32>
    %334 = vector.broadcast %333 : vector<16x1xf32> to vector<16x32xf32>
    %335 = arith.mulf %330, %334 : vector<16x32xf32>
    %336 = vector.broadcast %315 : vector<1x32xf32> to vector<16x32xf32>
    %337 = arith.mulf %335, %336 : vector<16x32xf32>
    %338 = vector.broadcast %317 : vector<1x32xf32> to vector<16x32xf32>
    %339 = arith.addf %337, %338 : vector<16x32xf32>
    %c1_163 = arith.constant 1 : index
    %c0_164 = arith.constant 0 : index
    %c0_165 = arith.constant 0 : index
    %340 = vector.load %arg17[%c1_163, %c0_164, %c0_165] : memref<2x32x64xf32, #tpu.memory_space<vmem>>, vector<1x32x64xf32>
    %341 = vector.shape_cast %340 : vector<1x32x64xf32> to vector<32x64xf32>
    %cst_166 = arith.constant dense<0.000000e+00> : vector<16x64xf32>
    %342 = tpu.matmul %339, %341, %cst_166 {dimension_numbers = #tpu.dot_dimension_numbers<[1], [0], [0], [1], [0, 0, 1, 1], [], []>} : vector<16x32xf32>, vector<32x64xf32>, vector<16x64xf32> -> vector<16x64xf32>
    %c1_167 = arith.constant 1 : index
    %c0_168 = arith.constant 0 : index
    %c0_169 = arith.constant 0 : index
    %343 = vector.load %arg18[%c1_167, %c0_168, %c0_169] : memref<2x1x64xf32, #tpu.memory_space<vmem>>, vector<1x1x64xf32>
    %344 = vector.shape_cast %343 : vector<1x1x64xf32> to vector<1x64xf32>
    %345 = vector.broadcast %344 : vector<1x64xf32> to vector<16x64xf32>
    %346 = arith.addf %342, %345 : vector<16x64xf32>
    %cst_170 = arith.constant 5.000000e-01 : f32
    %347 = vector.broadcast %cst_170 : f32 to vector<16x64xf32>
    %348 = arith.mulf %347, %346 : vector<16x64xf32>
    %cst_171 = arith.constant 4.471500e-02 : f32
    %349 = vector.broadcast %cst_171 : f32 to vector<16x64xf32>
    %350 = arith.mulf %349, %346 : vector<16x64xf32>
    %351 = arith.mulf %350, %346 : vector<16x64xf32>
    %352 = arith.mulf %351, %346 : vector<16x64xf32>
    %353 = arith.addf %346, %352 : vector<16x64xf32>
    %cst_172 = arith.constant 0.797884583 : f32
    %354 = vector.broadcast %cst_172 : f32 to vector<16x64xf32>
    %355 = arith.mulf %354, %353 : vector<16x64xf32>
    %356 = math.tanh %355 : vector<16x64xf32>
    %cst_173 = arith.constant 1.000000e+00 : f32
    %357 = vector.broadcast %cst_173 : f32 to vector<16x64xf32>
    %358 = arith.addf %357, %356 : vector<16x64xf32>
    %359 = arith.mulf %348, %358 : vector<16x64xf32>
    %c1_174 = arith.constant 1 : index
    %c0_175 = arith.constant 0 : index
    %c0_176 = arith.constant 0 : index
    %360 = vector.load %arg19[%c1_174, %c0_175, %c0_176] : memref<2x64x32xf32, #tpu.memory_space<vmem>>, vector<1x64x32xf32>
    %361 = vector.shape_cast %360 : vector<1x64x32xf32> to vector<64x32xf32>
    %cst_177 = arith.constant dense<0.000000e+00> : vector<16x32xf32>
    %362 = tpu.matmul %359, %361, %cst_177 {dimension_numbers = #tpu.dot_dimension_numbers<[1], [0], [0], [1], [0, 0, 1, 1], [], []>} : vector<16x64xf32>, vector<64x32xf32>, vector<16x32xf32> -> vector<16x32xf32>
    %c1_178 = arith.constant 1 : index
    %c0_179 = arith.constant 0 : index
    %c0_180 = arith.constant 0 : index
    %363 = vector.load %arg20[%c1_178, %c0_179, %c0_180] : memref<2x1x32xf32, #tpu.memory_space<vmem>>, vector<1x1x32xf32>
    %364 = vector.shape_cast %363 : vector<1x1x32xf32> to vector<1x32xf32>
    %365 = vector.broadcast %364 : vector<1x32xf32> to vector<16x32xf32>
    %366 = arith.addf %362, %365 : vector<16x32xf32>
    %367 = arith.addf %339, %366 : vector<16x32xf32>
    %c1_181 = arith.constant 1 : index
    %c0_182 = arith.constant 0 : index
    %c0_183 = arith.constant 0 : index
    %368 = vector.load %arg21[%c1_181, %c0_182, %c0_183] : memref<2x1x32xf32, #tpu.memory_space<vmem>>, vector<1x1x32xf32>
    %369 = vector.shape_cast %368 : vector<1x1x32xf32> to vector<1x32xf32>
    %c1_184 = arith.constant 1 : index
    %c0_185 = arith.constant 0 : index
    %c0_186 = arith.constant 0 : index
    %370 = vector.load %arg22[%c1_184, %c0_185, %c0_186] : memref<2x1x32xf32, #tpu.memory_space<vmem>>, vector<1x1x32xf32>
    %371 = vector.shape_cast %370 : vector<1x1x32xf32> to vector<1x32xf32>
    %cst_187 = arith.constant dense<0.000000e+00> : vector<16xf32>
    %372 = vector.multi_reduction <add>, %367, %cst_187 [1] : vector<16x32xf32> to vector<16xf32>
    %373 = vector.shape_cast %372 : vector<16xf32> to vector<16x1xf32>
    %cst_188 = arith.constant 3.200000e+01 : f32
    %374 = vector.broadcast %cst_188 : f32 to vector<16x1xf32>
    %375 = arith.divf %373, %374 : vector<16x1xf32>
    %376 = vector.broadcast %375 : vector<16x1xf32> to vector<16x32xf32>
    %377 = arith.subf %367, %376 : vector<16x32xf32>
    %378 = arith.mulf %377, %377 : vector<16x32xf32>
    %cst_189 = arith.constant dense<0.000000e+00> : vector<16xf32>
    %379 = vector.multi_reduction <add>, %378, %cst_189 [1] : vector<16x32xf32> to vector<16xf32>
    %380 = vector.shape_cast %379 : vector<16xf32> to vector<16x1xf32>
    %cst_190 = arith.constant 3.200000e+01 : f32
    %381 = vector.broadcast %cst_190 : f32 to vector<16x1xf32>
    %382 = arith.divf %380, %381 : vector<16x1xf32>
    %383 = vector.broadcast %375 : vector<16x1xf32> to vector<16x32xf32>
    %384 = arith.subf %367, %383 : vector<16x32xf32>
    %cst_191 = arith.constant 9.99999996E-13 : f32
    %385 = vector.broadcast %cst_191 : f32 to vector<16x1xf32>
    %386 = arith.addf %382, %385 : vector<16x1xf32>
    %387 = math.rsqrt %386 : vector<16x1xf32>
    %388 = vector.broadcast %387 : vector<16x1xf32> to vector<16x32xf32>
    %389 = arith.mulf %384, %388 : vector<16x32xf32>
    %390 = vector.broadcast %369 : vector<1x32xf32> to vector<16x32xf32>
    %391 = arith.mulf %389, %390 : vector<16x32xf32>
    %392 = vector.broadcast %371 : vector<1x32xf32> to vector<16x32xf32>
    %393 = arith.addf %391, %392 : vector<16x32xf32>
    %c0_192 = arith.constant 0 : index
    %c0_193 = arith.constant 0 : index
    %394 = vector.load %arg4[%c0_192, %c0_193] : memref<2x16xf32, #tpu.memory_space<vmem>>, vector<2x16xf32>
    %cst_194 = arith.constant dense<0.000000e+00> : vector<2x32xf32>
    %395 = tpu.matmul %394, %393, %cst_194 {dimension_numbers = #tpu.dot_dimension_numbers<[1], [0], [0], [1], [0, 0, 1, 1], [], []>} : vector<2x16xf32>, vector<16x32xf32>, vector<2x32xf32> -> vector<2x32xf32>
    %c0_195 = arith.constant 0 : index
    %c0_196 = arith.constant 0 : index
    %396 = vector.load %arg23[%c0_195, %c0_196] : memref<32x32xf32, #tpu.memory_space<vmem>>, vector<32x32xf32>
    %cst_197 = arith.constant dense<0.000000e+00> : vector<2x32xf32>
    %397 = tpu.matmul %395, %396, %cst_197 {dimension_numbers = #tpu.dot_dimension_numbers<[1], [0], [0], [1], [0, 0, 1, 1], [], []>} : vector<2x32xf32>, vector<32x32xf32>, vector<2x32xf32> -> vector<2x32xf32>
    %c0_198 = arith.constant 0 : index
    %c0_199 = arith.constant 0 : index
    %398 = vector.load %arg24[%c0_198, %c0_199] : memref<1x32xf32, #tpu.memory_space<vmem>>, vector<1x32xf32>
    %399 = vector.broadcast %398 : vector<1x32xf32> to vector<2x32xf32>
    %400 = arith.addf %397, %399 : vector<2x32xf32>
    %401 = math.tanh %400 : vector<2x32xf32>
    %c0_200 = arith.constant 0 : index
    %c0_201 = arith.constant 0 : index
    %402 = vector.load %arg25[%c0_200, %c0_201] : memref<32x4xf32, #tpu.memory_space<vmem>>, vector<32x4xf32>
    %cst_202 = arith.constant dense<0.000000e+00> : vector<2x4xf32>
    %403 = tpu.matmul %401, %402, %cst_202 {dimension_numbers = #tpu.dot_dimension_numbers<[1], [0], [0], [1], [0, 0, 1, 1], [], []>} : vector<2x32xf32>, vector<32x4xf32>, vector<2x4xf32> -> vector<2x4xf32>
    %c0_203 = arith.constant 0 : index
    %c0_204 = arith.constant 0 : index
    %404 = vector.load %arg26[%c0_203, %c0_204] : memref<1x4xf32, #tpu.memory_space<vmem>>, vector<1x4xf32>
    %405 = vector.broadcast %404 : vector<1x4xf32> to vector<2x4xf32>
    %406 = arith.addf %403, %405 : vector<2x4xf32>
    %cst_205 = arith.constant dense<0xFF800000> : vector<2xf32>
    %407 = vector.multi_reduction <maximumf>, %406, %cst_205 [1] : vector<2x4xf32> to vector<2xf32>
    %408 = vector.shape_cast %407 : vector<2xf32> to vector<2x1xf32>
    %409 = vector.broadcast %408 : vector<2x1xf32> to vector<2x4xf32>
    %410 = arith.subf %406, %409 : vector<2x4xf32>
    %411 = math.exp %410 : vector<2x4xf32>
    %cst_206 = arith.constant dense<0.000000e+00> : vector<2xf32>
    %412 = vector.multi_reduction <add>, %411, %cst_206 [1] : vector<2x4xf32> to vector<2xf32>
    %413 = vector.shape_cast %412 : vector<2xf32> to vector<2x1xf32>
    %414 = vector.broadcast %413 : vector<2x1xf32> to vector<2x4xf32>
    %415 = arith.divf %411, %414 : vector<2x4xf32>
    %c0_207 = arith.constant 0 : index
    %c0_208 = arith.constant 0 : index
    %416 = vector.load %arg27[%c0_207, %c0_208] : memref<2x4xf32, #tpu.memory_space<vmem>>, vector<2x4xf32>
    tpu.vector_store %arg27[%c0_207, %c0_208], %415 {strides = array<i32>} : memref<2x4xf32, #tpu.memory_space<vmem>>, vector<2x4xf32>,
    return
  }
  func.func @transform_0(%arg0: i32) -> (i32, i32) {
    %c0_i32 = arith.constant 0 : i32
    %c0_i32_0 = arith.constant 0 : i32
    %c0_i32_1 = arith.constant 0 : i32
    return %c0_i32, %c0_i32_0 : i32, i32
  }
  func.func @transform_1(%arg0: i32) -> (i32, i32) {
    %c0_i32 = arith.constant 0 : i32
    %c0_i32_0 = arith.constant 0 : i32
    %c0_i32_1 = arith.constant 0 : i32
    return %c0_i32, %c0_i32_0 : i32, i32
  }
  func.func @transform_2(%arg0: i32) -> (i32, i32, i32) {
    %c0_i32 = arith.constant 0 : i32
    %c0_i32_0 = arith.constant 0 : i32
    %c0_i32_1 = arith.constant 0 : i32
    %c0_i32_2 = arith.constant 0 : i32
    return %c0_i32, %c0_i32_0, %c0_i32_1 : i32, i32, i32
  }
  func.func @transform_3(%arg0: i32) -> (i32, i32) {
    %c0_i32 = arith.constant 0 : i32
    %c0_i32_0 = arith.constant 0 : i32
    %c0_i32_1 = arith.constant 0 : i32
    return %c0_i32, %c0_i32_0 : i32, i32
  }
  func.func @transform_4(%arg0: i32) -> (i32, i32) {
    %c0_i32 = arith.constant 0 : i32
    %c0_i32_0 = arith.constant 0 : i32
    %c0_i32_1 = arith.constant 0 : i32
    return %c0_i32, %c0_i32_0 : i32, i32
  }
  func.func @transform_5(%arg0: i32) -> (i32, i32) {
    %c0_i32 = arith.constant 0 : i32
    %c0_i32_0 = arith.constant 0 : i32
    %c0_i32_1 = arith.constant 0 : i32
    return %c0_i32, %c0_i32_0 : i32, i32
  }
  func.func @transform_6(%arg0: i32) -> (i32, i32, i32) {
    %c0_i32 = arith.constant 0 : i32
    %c0_i32_0 = arith.constant 0 : i32
    %c0_i32_1 = arith.constant 0 : i32
    %c0_i32_2 = arith.constant 0 : i32
    return %c0_i32, %c0_i32_0, %c0_i32_1 : i32, i32, i32
  }
  func.func @transform_7(%arg0: i32) -> (i32, i32, i32) {
    %c0_i32 = arith.constant 0 : i32
    %c0_i32_0 = arith.constant 0 : i32
    %c0_i32_1 = arith.constant 0 : i32
    %c0_i32_2 = arith.constant 0 : i32
    return %c0_i32, %c0_i32_0, %c0_i32_1 : i32, i32, i32
  }
  func.func @transform_8(%arg0: i32) -> (i32, i32, i32) {
    %c0_i32 = arith.constant 0 : i32
    %c0_i32_0 = arith.constant 0 : i32
    %c0_i32_1 = arith.constant 0 : i32
    %c0_i32_2 = arith.constant 0 : i32
    return %c0_i32, %c0_i32_0, %c0_i32_1 : i32, i32, i32
  }
  func.func @transform_9(%arg0: i32) -> (i32, i32, i32) {
    %c0_i32 = arith.constant 0 : i32
    %c0_i32_0 = arith.constant 0 : i32
    %c0_i32_1 = arith.constant 0 : i32
    %c0_i32_2 = arith.constant 0 : i32
    return %c0_i32, %c0_i32_0, %c0_i32_1 : i32, i32, i32
  }
  func.func @transform_10(%arg0: i32) -> (i32, i32, i32) {
    %c0_i32 = arith.constant 0 : i32
    %c0_i32_0 = arith.constant 0 : i32
    %c0_i32_1 = arith.constant 0 : i32
    %c0_i32_2 = arith.constant 0 : i32
    return %c0_i32, %c0_i32_0, %c0_i32_1 : i32, i32, i32
  }
  func.func @transform_11(%arg0: i32) -> (i32, i32, i32) {
    %c0_i32 = arith.constant 0 : i32
    %c0_i32_0 = arith.constant 0 : i32
    %c0_i32_1 = arith.constant 0 : i32
    %c0_i32_2 = arith.constant 0 : i32
    return %c0_i32, %c0_i32_0, %c0_i32_1 : i32, i32, i32
  }
  func.func @transform_12(%arg0: i32) -> (i32, i32, i32) {
    %c0_i32 = arith.constant 0 : i32
    %c0_i32_0 = arith.constant 0 : i32
    %c0_i32_1 = arith.constant 0 : i32
    %c0_i32_2 = arith.constant 0 : i32
    return %c0_i32, %c0_i32_0, %c0_i32_1 : i32, i32, i32
  }
  func.func @transform_13(%arg0: i32) -> (i32, i32, i32) {
    %c0_i32 = arith.constant 0 : i32
    %c0_i32_0 = arith.constant 0 : i32
    %c0_i32_1 = arith.constant 0 : i32
    %c0_i32_2 = arith.constant 0 : i32
    return %c0_i32, %c0_i32_0, %c0_i32_1 : i32, i32, i32
  }
  func.func @transform_14(%arg0: i32) -> (i32, i32, i32) {
    %c0_i32 = arith.constant 0 : i32
    %c0_i32_0 = arith.constant 0 : i32
    %c0_i32_1 = arith.constant 0 : i32
    %c0_i32_2 = arith.constant 0 : i32
    return %c0_i32, %c0_i32_0, %c0_i32_1 : i32, i32, i32
  }
  func.func @transform_15(%arg0: i32) -> (i32, i32, i32) {
    %c0_i32 = arith.constant 0 : i32
    %c0_i32_0 = arith.constant 0 : i32
    %c0_i32_1 = arith.constant 0 : i32
    %c0_i32_2 = arith.constant 0 : i32
    return %c0_i32, %c0_i32_0, %c0_i32_1 : i32, i32, i32
  }
  func.func @transform_16(%arg0: i32) -> (i32, i32, i32) {
    %c0_i32 = arith.constant 0 : i32
    %c0_i32_0 = arith.constant 0 : i32
    %c0_i32_1 = arith.constant 0 : i32
    %c0_i32_2 = arith.constant 0 : i32
    return %c0_i32, %c0_i32_0, %c0_i32_1 : i32, i32, i32
  }
  func.func @transform_17(%arg0: i32) -> (i32, i32, i32) {
    %c0_i32 = arith.constant 0 : i32
    %c0_i32_0 = arith.constant 0 : i32
    %c0_i32_1 = arith.constant 0 : i32
    %c0_i32_2 = arith.constant 0 : i32
    return %c0_i32, %c0_i32_0, %c0_i32_1 : i32, i32, i32
  }
  func.func @transform_18(%arg0: i32) -> (i32, i32, i32) {
    %c0_i32 = arith.constant 0 : i32
    %c0_i32_0 = arith.constant 0 : i32
    %c0_i32_1 = arith.constant 0 : i32
    %c0_i32_2 = arith.constant 0 : i32
    return %c0_i32, %c0_i32_0, %c0_i32_1 : i32, i32, i32
  }
  func.func @transform_19(%arg0: i32) -> (i32, i32, i32) {
    %c0_i32 = arith.constant 0 : i32
    %c0_i32_0 = arith.constant 0 : i32
    %c0_i32_1 = arith.constant 0 : i32
    %c0_i32_2 = arith.constant 0 : i32
    return %c0_i32, %c0_i32_0, %c0_i32_1 : i32, i32, i32
  }
  func.func @transform_20(%arg0: i32) -> (i32, i32, i32) {
    %c0_i32 = arith.constant 0 : i32
    %c0_i32_0 = arith.constant 0 : i32
    %c0_i32_1 = arith.constant 0 : i32
    %c0_i32_2 = arith.constant 0 : i32
    return %c0_i32, %c0_i32_0, %c0_i32_1 : i32, i32, i32
  }
  func.func @transform_21(%arg0: i32) -> (i32, i32, i32) {
    %c0_i32 = arith.constant 0 : i32
    %c0_i32_0 = arith.constant 0 : i32
    %c0_i32_1 = arith.constant 0 : i32
    %c0_i32_2 = arith.constant 0 : i32
    return %c0_i32, %c0_i32_0, %c0_i32_1 : i32, i32, i32
  }
  func.func @transform_22(%arg0: i32) -> (i32, i32) {
    %c0_i32 = arith.constant 0 : i32
    %c0_i32_0 = arith.constant 0 : i32
    %c0_i32_1 = arith.constant 0 : i32
    return %c0_i32, %c0_i32_0 : i32, i32
  }
  func.func @transform_23(%arg0: i32) -> (i32, i32) {
    %c0_i32 = arith.constant 0 : i32
    %c0_i32_0 = arith.constant 0 : i32
    %c0_i32_1 = arith.constant 0 : i32
    return %c0_i32, %c0_i32_0 : i32, i32
  }
  func.func @transform_24(%arg0: i32) -> (i32, i32) {
    %c0_i32 = arith.constant 0 : i32
    %c0_i32_0 = arith.constant 0 : i32
    %c0_i32_1 = arith.constant 0 : i32
    return %c0_i32, %c0_i32_0 : i32, i32
  }
  func.func @transform_25(%arg0: i32) -> (i32, i32) {
    %c0_i32 = arith.constant 0 : i32
    %c0_i32_0 = arith.constant 0 : i32
    %c0_i32_1 = arith.constant 0 : i32
    return %c0_i32, %c0_i32_0 : i32, i32
  }
  func.func @transform_26(%arg0: i32) -> (i32, i32) {
    %c0_i32 = arith.constant 0 : i32
    %c0_i32_0 = arith.constant 0 : i32
    %c0_i32_1 = arith.constant 0 : i32
    return %c0_i32, %c0_i32_0 : i32, i32
  }
}

</mosaic_0001>

<llo_original>
// kernel: bert_model_forward.1
$region0: #{bert_model_forward.1}
  #allocation0 [shape = 'u32[]', space=smem, size = 0x4, offset = 0x4, fixed_abs, tag = 'smem constant byte address 0x4 - core index']
  #allocation1 [shape = 'u32[72,128]{1,0:T(1,128)}', space=vmem, size = 0x9000, scoped, tag = 'internal scratch']
  %s0 = inlined_call_operand.vmem [shape: f32[16,32], index: 0, kind: input, shape index: {}]
  %s1 = inlined_call_operand.vmem [shape: f32[16,16], index: 1, kind: input, shape index: {}]
  %s2 = inlined_call_operand.vmem [shape: f32[4,1,32], index: 2, kind: input, shape index: {}]
  %s3 = inlined_call_operand.vmem [shape: f32[2,16], index: 3, kind: input, shape index: {}]
  %s4 = inlined_call_operand.vmem [shape: f32[1,32], index: 4, kind: input, shape index: {}]
  %s5 = inlined_call_operand.vmem [shape: f32[1,32], index: 5, kind: input, shape index: {}]
  %s6 = inlined_call_operand.vmem [shape: f32[2,32,32], index: 6, kind: input, shape index: {}]
  %s7 = inlined_call_operand.vmem [shape: f32[2,1,32], index: 7, kind: input, shape index: {}]
  %s8 = inlined_call_operand.vmem [shape: f32[2,32,32], index: 8, kind: input, shape index: {}]
  %s9 = inlined_call_operand.vmem [shape: f32[2,1,32], index: 9, kind: input, shape index: {}]
  %s10 = inlined_call_operand.vmem [shape: f32[2,32,32], index: 10, kind: input, shape index: {}]
  %s11 = inlined_call_operand.vmem [shape: f32[2,1,32], index: 11, kind: input, shape index: {}]
  %s12 = inlined_call_operand.vmem [shape: f32[2,32,32], index: 12, kind: input, shape index: {}]
  %s13 = inlined_call_operand.vmem [shape: f32[2,1,32], index: 13, kind: input, shape index: {}]
  %s14 = inlined_call_operand.vmem [shape: f32[2,1,32], index: 14, kind: input, shape index: {}]
  %s15 = inlined_call_operand.vmem [shape: f32[2,1,32], index: 15, kind: input, shape index: {}]
  %s16 = inlined_call_operand.vmem [shape: f32[2,32,64], index: 16, kind: input, shape index: {}]
  %s17 = inlined_call_operand.vmem [shape: f32[2,1,64], index: 17, kind: input, shape index: {}]
  %s18 = inlined_call_operand.vmem [shape: f32[2,64,32], index: 18, kind: input, shape index: {}]
  %s19 = inlined_call_operand.vmem [shape: f32[2,1,32], index: 19, kind: input, shape index: {}]
  %s20 = inlined_call_operand.vmem [shape: f32[2,1,32], index: 20, kind: input, shape index: {}]
  %s21 = inlined_call_operand.vmem [shape: f32[2,1,32], index: 21, kind: input, shape index: {}]
  %s22 = inlined_call_operand.vmem [shape: f32[32,32], index: 22, kind: input, shape index: {}]
  %s23 = inlined_call_operand.vmem [shape: f32[1,32], index: 23, kind: input, shape index: {}]
  %s24 = inlined_call_operand.vmem [shape: f32[32,4], index: 24, kind: input, shape index: {}]
  %s25 = inlined_call_operand.vmem [shape: f32[1,4], index: 25, kind: input, shape index: {}]
  %s26 = inlined_call_operand.hbm [shape: f32[2,4], index: 26, kind: output, shape index: {}]
  %s27 = sld [smem:[#allocation0]]
  $region114: #{bert_model_forward.1} parent=0
    _
  %s29 = ssub.s32 1, %s27
  %s30 = scalar_select 0, %s29, %s27
  $region1: #{bert_model_forward.1} parent=0
    #allocation2 [shape = 'u8[1024]{0}', space=vmem, size = 0x400, scoped, tag = 'output window, operand 0, single buffered']
    #allocation3 [shape = 's32[1]{0}', space=sflag, size = 0x4, scoped, tag = 'scoped memory for bert_model_forward.1']
    %31 = vsyncpa [#allocation3], 0
    // Predicated region
    $region2: #{bert_model_forward.1} parent=1 // pred_check
      _
    $region3: #{bert_model_forward.1} parent=1 // pred_check_branch
      %33 = sbr.rel (0) target = $region5
    $region4: #{bert_model_forward.1} parent=1 // pred_region
      _
    $region5: #{bert_model_forward.1} parent=1 // pred_fallthru
      _
    // Predicated region
    $region6: #{bert_model_forward.1} parent=1 // pred_check
      _
    $region7: #{bert_model_forward.1} parent=1 // pred_check_branch
      %35 = sbr.rel (0) target = $region9
    $region8: #{bert_model_forward.1} parent=1 // pred_region
      _
    $region9: #{bert_model_forward.1} parent=1 // pred_fallthru
      _
    // Predicated region
    $region10: #{bert_model_forward.1} parent=1 // pred_check
      _
    $region11: #{bert_model_forward.1} parent=1 // pred_check_branch
      %37 = sbr.rel (0) target = $region13
    $region12: #{bert_model_forward.1} parent=1 // pred_region
      _
    $region13: #{bert_model_forward.1} parent=1 // pred_fallthru
      _
    // Predicated region
    $region14: #{bert_model_forward.1} parent=1 // pred_check
      _
    $region15: #{bert_model_forward.1} parent=1 // pred_check_branch
      %39 = sbr.rel (0) target = $region17
    $region16: #{bert_model_forward.1} parent=1 // pred_region
      _
    $region17: #{bert_model_forward.1} parent=1 // pred_fallthru
      _
    // Predicated region
    $region18: #{bert_model_forward.1} parent=1 // pred_check
      _
    $region19: #{bert_model_forward.1} parent=1 // pred_check_branch
      %41 = sbr.rel (0) target = $region21
    $region20: #{bert_model_forward.1} parent=1 // pred_region
      _
    $region21: #{bert_model_forward.1} parent=1 // pred_fallthru
      _
    // Predicated region
    $region22: #{bert_model_forward.1} parent=1 // pred_check
      _
    $region23: #{bert_model_forward.1} parent=1 // pred_check_branch
      %43 = sbr.rel (0) target = $region25
    $region24: #{bert_model_forward.1} parent=1 // pred_region
      _
    $region25: #{bert_model_forward.1} parent=1 // pred_fallthru
      _
    // Predicated region
    $region26: #{bert_model_forward.1} parent=1 // pred_check
      _
    $region27: #{bert_model_forward.1} parent=1 // pred_check_branch
      %45 = sbr.rel (0) target = $region29
    $region28: #{bert_model_forward.1} parent=1 // pred_region
      _
    $region29: #{bert_model_forward.1} parent=1 // pred_fallthru
      _
    // Predicated region
    $region30: #{bert_model_forward.1} parent=1 // pred_check
      _
    $region31: #{bert_model_forward.1} parent=1 // pred_check_branch
      %47 = sbr.rel (0) target = $region33
    $region32: #{bert_model_forward.1} parent=1 // pred_region
      _
    $region33: #{bert_model_forward.1} parent=1 // pred_fallthru
      _
    // Predicated region
    $region34: #{bert_model_forward.1} parent=1 // pred_check
      _
    $region35: #{bert_model_forward.1} parent=1 // pred_check_branch
      %49 = sbr.rel (0) target = $region37
    $region36: #{bert_model_forward.1} parent=1 // pred_region
      _
    $region37: #{bert_model_forward.1} parent=1 // pred_fallthru
      _
    // Predicated region
    $region38: #{bert_model_forward.1} parent=1 // pred_check
      _
    $region39: #{bert_model_forward.1} parent=1 // pred_check_branch
      %51 = sbr.rel (0) target = $region41
    $region40: #{bert_model_forward.1} parent=1 // pred_region
      _
    $region41: #{bert_model_forward.1} parent=1 // pred_fallthru
      _
    // Predicated region
    $region42: #{bert_model_forward.1} parent=1 // pred_check
      _
    $region43: #{bert_model_forward.1} parent=1 // pred_check_branch
      %53 = sbr.rel (0) target = $region45
    $region44: #{bert_model_forward.1} parent=1 // pred_region
      _
    $region45: #{bert_model_forward.1} parent=1 // pred_fallthru
      _
    // Predicated region
    $region46: #{bert_model_forward.1} parent=1 // pred_check
      _
    $region47: #{bert_model_forward.1} parent=1 // pred_check_branch
      %55 = sbr.rel (0) target = $region49
    $region48: #{bert_model_forward.1} parent=1 // pred_region
      _
    $region49: #{bert_model_forward.1} parent=1 // pred_fallthru
      _
    // Predicated region
    $region50: #{bert_model_forward.1} parent=1 // pred_check
      _
    $region51: #{bert_model_forward.1} parent=1 // pred_check_branch
      %57 = sbr.rel (0) target = $region53
    $region52: #{bert_model_forward.1} parent=1 // pred_region
      _
    $region53: #{bert_model_forward.1} parent=1 // pred_fallthru
      _
    // Predicated region
    $region54: #{bert_model_forward.1} parent=1 // pred_check
      _
    $region55: #{bert_model_forward.1} parent=1 // pred_check_branch
      %59 = sbr.rel (0) target = $region57
    $region56: #{bert_model_forward.1} parent=1 // pred_region
      _
    $region57: #{bert_model_forward.1} parent=1 // pred_fallthru
      _
    // Predicated region
    $region58: #{bert_model_forward.1} parent=1 // pred_check
      _
    $region59: #{bert_model_forward.1} parent=1 // pred_check_branch
      %61 = sbr.rel (0) target = $region61
    $region60: #{bert_model_forward.1} parent=1 // pred_region
      _
    $region61: #{bert_model_forward.1} parent=1 // pred_fallthru
      _
    // Predicated region
    $region62: #{bert_model_forward.1} parent=1 // pred_check
      _
    $region63: #{bert_model_forward.1} parent=1 // pred_check_branch
      %63 = sbr.rel (0) target = $region65
    $region64: #{bert_model_forward.1} parent=1 // pred_region
      _
    $region65: #{bert_model_forward.1} parent=1 // pred_fallthru
      _
    // Predicated region
    $region66: #{bert_model_forward.1} parent=1 // pred_check
      _
    $region67: #{bert_model_forward.1} parent=1 // pred_check_branch
      %65 = sbr.rel (0) target = $region69
    $region68: #{bert_model_forward.1} parent=1 // pred_region
      _
    $region69: #{bert_model_forward.1} parent=1 // pred_fallthru
      _
    // Predicated region
    $region70: #{bert_model_forward.1} parent=1 // pred_check
      _
    $region71: #{bert_model_forward.1} parent=1 // pred_check_branch
      %67 = sbr.rel (0) target = $region73
    $region72: #{bert_model_forward.1} parent=1 // pred_region
      _
    $region73: #{bert_model_forward.1} parent=1 // pred_fallthru
      _
    // Predicated region
    $region74: #{bert_model_forward.1} parent=1 // pred_check
      _
    $region75: #{bert_model_forward.1} parent=1 // pred_check_branch
      %69 = sbr.rel (0) target = $region77
    $region76: #{bert_model_forward.1} parent=1 // pred_region
      _
    $region77: #{bert_model_forward.1} parent=1 // pred_fallthru
      _
    // Predicated region
    $region78: #{bert_model_forward.1} parent=1 // pred_check
      _
    $region79: #{bert_model_forward.1} parent=1 // pred_check_branch
      %71 = sbr.rel (0) target = $region81
    $region80: #{bert_model_forward.1} parent=1 // pred_region
      _
    $region81: #{bert_model_forward.1} parent=1 // pred_fallthru
      _
    // Predicated region
    $region82: #{bert_model_forward.1} parent=1 // pred_check
      _
    $region83: #{bert_model_forward.1} parent=1 // pred_check_branch
      %73 = sbr.rel (0) target = $region85
    $region84: #{bert_model_forward.1} parent=1 // pred_region
      _
    $region85: #{bert_model_forward.1} parent=1 // pred_fallthru
      _
    // Predicated region
    $region86: #{bert_model_forward.1} parent=1 // pred_check
      _
    $region87: #{bert_model_forward.1} parent=1 // pred_check_branch
      %75 = sbr.rel (0) target = $region89
    $region88: #{bert_model_forward.1} parent=1 // pred_region
      _
    $region89: #{bert_model_forward.1} parent=1 // pred_fallthru
      _
    // Predicated region
    $region90: #{bert_model_forward.1} parent=1 // pred_check
      _
    $region91: #{bert_model_forward.1} parent=1 // pred_check_branch
      %77 = sbr.rel (0) target = $region93
    $region92: #{bert_model_forward.1} parent=1 // pred_region
      _
    $region93: #{bert_model_forward.1} parent=1 // pred_fallthru
      _
    // Predicated region
    $region94: #{bert_model_forward.1} parent=1 // pred_check
      _
    $region95: #{bert_model_forward.1} parent=1 // pred_check_branch
      %79 = sbr.rel (0) target = $region97
    $region96: #{bert_model_forward.1} parent=1 // pred_region
      _
    $region97: #{bert_model_forward.1} parent=1 // pred_fallthru
      _
    // Predicated region
    $region98: #{bert_model_forward.1} parent=1 // pred_check
      _
    $region99: #{bert_model_forward.1} parent=1 // pred_check_branch
      %81 = sbr.rel (0) target = $region101
    $region100: #{bert_model_forward.1} parent=1 // pred_region
      _
    $region101: #{bert_model_forward.1} parent=1 // pred_fallthru
      _
    // Predicated region
    $region102: #{bert_model_forward.1} parent=1 // pred_check
      _
    $region103: #{bert_model_forward.1} parent=1 // pred_check_branch
      %83 = sbr.rel (0) target = $region105
    $region104: #{bert_model_forward.1} parent=1 // pred_region
      _
    $region105: #{bert_model_forward.1} parent=1 // pred_fallthru
      _
    %v84 = vld [vmem:[%s0] sm:$0xff]
    %v85 = vld [vmem:[%s0 + $0x8] sm:$0xff]
    %v86 = vld [vmem:[%s4] sm:$0x1]
    %v87 = vld [vmem:[%s5] sm:$0x1]
    %vm88 = vcmask 261120
    %v89 = vsel %vm88, %v84, 0.0
    %90 = vadd.xlane.f32.xlu0 %v89
    %v91 = vpop.xlane.xlu0 %90
    %v92 = vsel %vm88, %v85, 0.0
    %93 = vadd.xlane.f32.xlu0 %v92
    %v94 = vpop.xlane.xlu0 %93
    %v95 = vrcp.pop 32.0
    %v96 = vmul.f32 32.0, %v95
    %v97 = vsub.f32 1.0, %v96
    %v98 = vmul.f32 %v95, %v97
    %v99 = vadd.f32 %v95, %v98
    %vm100 = vweird.f32 %v95
    %v101 = vsel %vm100, %v95, %v99
    %v102 = vmul.f32 %v91, %v101
    %v103 = vmul.f32 %v94, %v101
    %v104 = vsub.f32 %v84, %v102
    %v105 = vsub.f32 %v85, %v103
    %v106 = vmul.f32 %v104, %v104
    %v107 = vmul.f32 %v105, %v105
    %v108 = vsel %vm88, %v106, 0.0
    %109 = vadd.xlane.f32.xlu0 %v108
    %v110 = vpop.xlane.xlu0 %109
    %v111 = vsel %vm88, %v107, 0.0
    %112 = vadd.xlane.f32.xlu0 %v111
    %v113 = vpop.xlane.xlu0 %112
    %v114 = vmul.f32 %v110, %v101
    %v115 = vmul.f32 %v113, %v101
    %v116 = vadd.f32 %v114, 1e-12
    %v117 = vadd.f32 %v115, 1e-12
    %v118 = vrsqrt.pop %v116
    %v119 = vmul.f32 %v118, %v116
    %v120 = vmul.f32 %v119, %v118
    %v121 = vmul.f32 0.5, %v120
    %v122 = vsub.f32 1.5, %v121
    %v123 = vmul.f32 %v118, %v122
    %vm124 = vweird.f32 %v116
    %vm125 = vweird.f32 %v118
    %vm126 = vmor %vm124, %vm125
    %v127 = vsel %vm126, %v118, %v123
    %v128 = vrsqrt.pop %v117
    %v129 = vmul.f32 %v128, %v117
    %v130 = vmul.f32 %v129, %v128
    %v131 = vmul.f32 0.5, %v130
    %v132 = vsub.f32 1.5, %v131
    %v133 = vmul.f32 %v128, %v132
    %vm134 = vweird.f32 %v117
    %vm135 = vweird.f32 %v128
    %vm136 = vmor %vm134, %vm135
    %v137 = vsel %vm136, %v128, %v133
    %v138 = vmul.f32 %v104, %v127
    %v139 = vmul.f32 %v105, %v137
    %v141 = vperm.slane %v86, 0
    %v143 = vmul.f32 %v138, %v141
    %v144 = vmul.f32 %v139, %v141
    %v146 = vperm.slane %v87, 0
    %v148 = vadd.f32 %v143, %v146
    %v149 = vadd.f32 %v144, %v146
    %v150 = vld [vmem:[%s1] sm:$0xff]
    %v151 = vld [vmem:[%s1 + $0x8] sm:$0xff]
    %v152 = vld [vmem:[%s2] sm:$0x1]
    %s153 = scalar_lea.vmem %s2, 1
    %v154 = vld [vmem:[%s153] sm:$0x1]
    %s155 = scalar_lea.vmem %s2, 2
    %v156 = vld [vmem:[%s155] sm:$0x1]
    %s157 = scalar_lea.vmem %s2, 3
    %v158 = vld [vmem:[%s157] sm:$0x1]
    %v159 = vld [vmem:[%s6] sm:$0xff]
    %v160 = vld [vmem:[%s6 + $0x8] sm:$0xff]
    %v161 = vld [vmem:[%s6 + $0x10] sm:$0xff]
    %v162 = vld [vmem:[%s6 + $0x18] sm:$0xff]
    %v163 = vld [vmem:[%s7] sm:$0x1]
    %v165 = vperm.slane %v163, 0
    %v168 = vsel %vm88, %v148, 0
    %v171 = vsel %vm88, %v149, 0
    %173 = vmatpush.msra.mxu0 0.0
    %174 = vmatpush.msra.mxu0 0.0
    %175 = vmatpush.msra.mxu0 0.0
    %176 = vmatpush.msra.mxu0 0.0
    %177 = vmatpush.msra.mxu0 0.0
    %178 = vmatpush.msra.mxu0 0.0
    %179 = vmatpush.msra.mxu0 0.0
    %180 = vmatpush.msra.mxu0 0.0
    %181 = vmatpush.msra.mxu0 0.0
    %182 = vmatpush.msra.mxu0 0.0
    %183 = vmatpush.msra.mxu0 0.0
    %184 = vmatpush.msra.mxu0 0.0
    %185 = vmatpush.msra.mxu0 %v162
    %186 = vmatpush.msra.mxu0 %v161
    %187 = vmatpush.msra.mxu0 %v160
    %188 = vmatpush.msra.mxu0 %v159
    %189 = vmatmul.f32.gmra.mxu0 %v168
    %v190 = vpop.f32.mrf.mxu0
    %v191 = vadd.f32 %v165, %v190
    %192 = vmatmul.f32.gmra.mxu0 %v171
    %v193 = vpop.f32.mrf.mxu0
    %v194 = vadd.f32 %v165, %v193
    %195 = vdwg.mxu0
    %v196 = vld [vmem:[%s8] sm:$0xff]
    %v197 = vld [vmem:[%s8 + $0x8] sm:$0xff]
    %v198 = vld [vmem:[%s8 + $0x10] sm:$0xff]
    %v199 = vld [vmem:[%s8 + $0x18] sm:$0xff]
    %v200 = vld [vmem:[%s9] sm:$0x1]
    %v202 = vperm.slane %v200, 0
    %204 = vmatpush.msra.mxu0 0.0
    %205 = vmatpush.msra.mxu0 0.0
    %206 = vmatpush.msra.mxu0 0.0
    %207 = vmatpush.msra.mxu0 0.0
    %208 = vmatpush.msra.mxu0 0.0
    %209 = vmatpush.msra.mxu0 0.0
    %210 = vmatpush.msra.mxu0 0.0
    %211 = vmatpush.msra.mxu0 0.0
    %212 = vmatpush.msra.mxu0 0.0
    %213 = vmatpush.msra.mxu0 0.0
    %214 = vmatpush.msra.mxu0 0.0
    %215 = vmatpush.msra.mxu0 0.0
    %216 = vmatpush.msra.mxu0 %v199
    %217 = vmatpush.msra.mxu0 %v198
    %218 = vmatpush.msra.mxu0 %v197
    %219 = vmatpush.msra.mxu0 %v196
    %220 = vmatmul.f32.gmra.mxu0 %v168
    %v221 = vpop.f32.mrf.mxu0
    %v222 = vadd.f32 %v202, %v221
    %223 = vmatmul.f32.gmra.mxu0 %v171
    %v224 = vpop.f32.mrf.mxu0
    %v225 = vadd.f32 %v202, %v224
    %226 = vdwg.mxu0
    %v227 = vld [vmem:[%s10] sm:$0xff]
    %v228 = vld [vmem:[%s10 + $0x8] sm:$0xff]
    %v229 = vld [vmem:[%s10 + $0x10] sm:$0xff]
    %v230 = vld [vmem:[%s10 + $0x18] sm:$0xff]
    %v231 = vld [vmem:[%s11] sm:$0x1]
    %v233 = vperm.slane %v231, 0
    %235 = vmatpush.msra.mxu0 0.0
    %236 = vmatpush.msra.mxu0 0.0
    %237 = vmatpush.msra.mxu0 0.0
    %238 = vmatpush.msra.mxu0 0.0
    %239 = vmatpush.msra.mxu0 0.0
    %240 = vmatpush.msra.mxu0 0.0
    %241 = vmatpush.msra.mxu0 0.0
    %242 = vmatpush.msra.mxu0 0.0
    %243 = vmatpush.msra.mxu0 0.0
    %244 = vmatpush.msra.mxu0 0.0
    %245 = vmatpush.msra.mxu0 0.0
    %246 = vmatpush.msra.mxu0 0.0
    %247 = vmatpush.msra.mxu0 %v230
    %248 = vmatpush.msra.mxu0 %v229
    %249 = vmatpush.msra.mxu0 %v228
    %250 = vmatpush.msra.mxu0 %v227
    %251 = vmatmul.f32.gmra.mxu0 %v168
    %v252 = vpop.f32.mrf.mxu0
    %v253 = vadd.f32 %v233, %v252
    %254 = vmatmul.f32.gmra.mxu0 %v171
    %v255 = vpop.f32.mrf.mxu0
    %v256 = vadd.f32 %v233, %v255
    %257 = vdwg.mxu0
    %v258 = vmul.f32 %v191, 0.35355338
    %v259 = vmul.f32 %v194, 0.35355338
    %v261 = vperm.slane %v152, 0
    %v263 = vmul.f32 %v258, %v261
    %v264 = vmul.f32 %v259, %v261
    %v266 = vsel %vm88, %v263, 0
    %v269 = vsel %vm88, %v264, 0
    %v272 = vsel %vm88, %v222, 0
    %v275 = vsel %vm88, %v225, 0
    %277 = vmatpush.xpose.msra.mxu0 0.0
    %278 = vmatpush.xpose.msra.mxu0 0.0
    %279 = vmatpush.xpose.msra.mxu0 0.0
    %280 = vmatpush.xpose.msra.mxu0 0.0
    %281 = vmatpush.xpose.msra.mxu0 0.0
    %282 = vmatpush.xpose.msra.mxu0 0.0
    %283 = vmatpush.xpose.msra.mxu0 0.0
    %284 = vmatpush.xpose.msra.mxu0 0.0
    %285 = vmatpush.xpose.msra.mxu0 0.0
    %286 = vmatpush.xpose.msra.mxu0 0.0
    %287 = vmatpush.xpose.msra.mxu0 0.0
    %288 = vmatpush.xpose.msra.mxu0 0.0
    %289 = vmatpush.xpose.msra.mxu0 0.0
    %290 = vmatpush.xpose.msra.mxu0 0.0
    %291 = vmatpush.xpose.msra.mxu0 %v275
    %292 = vmatpush.xpose.msra.mxu0 %v272
    %293 = vmatmul.f32.gmra.mxu0 %v266
    %v294 = vpop.f32.mrf.mxu0
    %v295 = vadd.f32 %v150, %v294
    %296 = vmatmul.f32.gmra.mxu0 %v269
    %v297 = vpop.f32.mrf.mxu0
    %v298 = vadd.f32 %v151, %v297
    %299 = vdwg.mxu0
    %vm300 = vcmask 130048
    %v301 = vsel %vm300, %v295, -inf
    %302 = vmax.xlane.f32.xlu0 %v301
    %v303 = vpop.xlane.xlu0 %302
    %v304 = vsel %vm300, %v298, -inf
    %305 = vmax.xlane.f32.xlu0 %v304
    %v306 = vpop.xlane.xlu0 %305
    %v307 = vsub.f32 %v295, %v303
    %v308 = vsub.f32 %v298, %v306
    %v309 = vmul.f32 %v307, 1.442695
    %v310 = vpow.pop %v309
    %v311 = vmul.f32 %v308, 1.442695
    %v312 = vpow.pop %v311
    %v313 = vsel %vm300, %v310, 0.0
    %314 = vadd.xlane.f32.xlu0 %v313
    %v315 = vpop.xlane.xlu0 %314
    %v316 = vsel %vm300, %v312, 0.0
    %317 = vadd.xlane.f32.xlu0 %v316
    %v318 = vpop.xlane.xlu0 %317
    %v319 = vrcp.pop %v315
    %v320 = vmul.f32 %v315, %v319
    %v321 = vsub.f32 1.0, %v320
    %v322 = vmul.f32 %v319, %v321
    %v323 = vadd.f32 %v319, %v322
    %vm324 = vweird.f32 %v315
    %vm325 = vweird.f32 %v319
    %vm326 = vmor %vm324, %vm325
    %v327 = vsel %vm326, %v319, %v323
    %v328 = vand.u32 2147483647, %v315
    %vm329 = vcmp.eq.f32.partialorder %v328, 8.507059e+37
    %v330 = vand.u32 %v315, 2147483648
    %v331 = vor.u32 1.1754944e-38, %v330
    %v332 = vsel %vm329, %v331, %v327
    %v333 = vmul.f32 %v310, %v332
    %v334 = vrcp.pop %v318
    %v335 = vmul.f32 %v318, %v334
    %v336 = vsub.f32 1.0, %v335
    %v337 = vmul.f32 %v334, %v336
    %v338 = vadd.f32 %v334, %v337
    %vm339 = vweird.f32 %v318
    %vm340 = vweird.f32 %v334
    %vm341 = vmor %vm339, %vm340
    %v342 = vsel %vm341, %v334, %v338
    %v343 = vand.u32 2147483647, %v318
    %vm344 = vcmp.eq.f32.partialorder %v343, 8.507059e+37
    %v345 = vand.u32 %v318, 2147483648
    %v346 = vor.u32 1.1754944e-38, %v345
    %v347 = vsel %vm344, %v346, %v342
    %v348 = vmul.f32 %v312, %v347
    %v349 = vmul.f32 %v253, %v261
    %v350 = vmul.f32 %v256, %v261
    %v352 = vperm.slane %v154, 0
    %v354 = vmul.f32 %v258, %v352
    %v355 = vmul.f32 %v259, %v352
    %v357 = vsel %vm88, %v354, 0
    %v360 = vsel %vm88, %v355, 0
    %362 = vmatpush.xpose.msra.mxu0 0.0
    %363 = vmatpush.xpose.msra.mxu0 0.0
    %364 = vmatpush.xpose.msra.mxu0 0.0
    %365 = vmatpush.xpose.msra.mxu0 0.0
    %366 = vmatpush.xpose.msra.mxu0 0.0
    %367 = vmatpush.xpose.msra.mxu0 0.0
    %368 = vmatpush.xpose.msra.mxu0 0.0
    %369 = vmatpush.xpose.msra.mxu0 0.0
    %370 = vmatpush.xpose.msra.mxu0 0.0
    %371 = vmatpush.xpose.msra.mxu0 0.0
    %372 = vmatpush.xpose.msra.mxu0 0.0
    %373 = vmatpush.xpose.msra.mxu0 0.0
    %374 = vmatpush.xpose.msra.mxu0 0.0
    %375 = vmatpush.xpose.msra.mxu0 0.0
    %376 = vmatpush.xpose.msra.mxu0 %v275
    %377 = vmatpush.xpose.msra.mxu0 %v272
    %378 = vmatmul.f32.gmra.mxu0 %v357
    %v379 = vpop.f32.mrf.mxu0
    %v380 = vadd.f32 %v150, %v379
    %381 = vmatmul.f32.gmra.mxu0 %v360
    %v382 = vpop.f32.mrf.mxu0
    %v383 = vadd.f32 %v151, %v382
    %384 = vdwg.mxu0
    %v385 = vsel %vm300, %v380, -inf
    %386 = vmax.xlane.f32.xlu0 %v385
    %v387 = vpop.xlane.xlu0 %386
    %v388 = vsel %vm300, %v383, -inf
    %389 = vmax.xlane.f32.xlu0 %v388
    %v390 = vpop.xlane.xlu0 %389
    %v391 = vsub.f32 %v380, %v387
    %v392 = vsub.f32 %v383, %v390
    %v393 = vmul.f32 %v391, 1.442695
    %v394 = vpow.pop %v393
    %v395 = vmul.f32 %v392, 1.442695
    %v396 = vpow.pop %v395
    %v397 = vsel %vm300, %v394, 0.0
    %398 = vadd.xlane.f32.xlu0 %v397
    %v399 = vpop.xlane.xlu0 %398
    %v400 = vsel %vm300, %v396, 0.0
    %401 = vadd.xlane.f32.xlu0 %v400
    %v402 = vpop.xlane.xlu0 %401
    %v403 = vrcp.pop %v399
    %v404 = vmul.f32 %v399, %v403
    %v405 = vsub.f32 1.0, %v404
    %v406 = vmul.f32 %v403, %v405
    %v407 = vadd.f32 %v403, %v406
    %vm408 = vweird.f32 %v399
    %vm409 = vweird.f32 %v403
    %vm410 = vmor %vm408, %vm409
    %v411 = vsel %vm410, %v403, %v407
    %v412 = vand.u32 2147483647, %v399
    %vm413 = vcmp.eq.f32.partialorder %v412, 8.507059e+37
    %v414 = vand.u32 %v399, 2147483648
    %v415 = vor.u32 1.1754944e-38, %v414
    %v416 = vsel %vm413, %v415, %v411
    %v417 = vmul.f32 %v394, %v416
    %v418 = vrcp.pop %v402
    %v419 = vmul.f32 %v402, %v418
    %v420 = vsub.f32 1.0, %v419
    %v421 = vmul.f32 %v418, %v420
    %v422 = vadd.f32 %v418, %v421
    %vm423 = vweird.f32 %v402
    %vm424 = vweird.f32 %v418
    %vm425 = vmor %vm423, %vm424
    %v426 = vsel %vm425, %v418, %v422
    %v427 = vand.u32 2147483647, %v402
    %vm428 = vcmp.eq.f32.partialorder %v427, 8.507059e+37
    %v429 = vand.u32 %v402, 2147483648
    %v430 = vor.u32 1.1754944e-38, %v429
    %v431 = vsel %vm428, %v430, %v426
    %v432 = vmul.f32 %v396, %v431
    %v433 = vmul.f32 %v253, %v352
    %v434 = vmul.f32 %v256, %v352
    %v436 = vsel %vm300, %v417, 0
    %v439 = vsel %vm300, %v432, 0
    %441 = vmatpush.msra.mxu0 0.0
    %442 = vmatpush.msra.mxu0 0.0
    %443 = vmatpush.msra.mxu0 0.0
    %444 = vmatpush.msra.mxu0 0.0
    %445 = vmatpush.msra.mxu0 0.0
    %446 = vmatpush.msra.mxu0 0.0
    %447 = vmatpush.msra.mxu0 0.0
    %448 = vmatpush.msra.mxu0 0.0
    %449 = vmatpush.msra.mxu0 0.0
    %450 = vmatpush.msra.mxu0 0.0
    %451 = vmatpush.msra.mxu0 0.0
    %452 = vmatpush.msra.mxu0 0.0
    %453 = vmatpush.msra.mxu0 0.0
    %454 = vmatpush.msra.mxu0 0.0
    %455 = vmatpush.msra.mxu0 %v434
    %456 = vmatpush.msra.mxu0 %v433
    %457 = vmatmul.f32.gmra.mxu0 %v436
    %v458 = vpop.f32.mrf.mxu0
    %v459 = vadd.f32 0.0, %v458
    %460 = vmatmul.f32.gmra.mxu0 %v439
    %v461 = vpop.f32.mrf.mxu0
    %v462 = vadd.f32 0.0, %v461
    %463 = vdwg.mxu0
    %v465 = vsel %vm300, %v333, 0
    %v468 = vsel %vm300, %v348, 0
    %470 = vmatpush.msra.mxu0 0.0
    %471 = vmatpush.msra.mxu0 0.0
    %472 = vmatpush.msra.mxu0 0.0
    %473 = vmatpush.msra.mxu0 0.0
    %474 = vmatpush.msra.mxu0 0.0
    %475 = vmatpush.msra.mxu0 0.0
    %476 = vmatpush.msra.mxu0 0.0
    %477 = vmatpush.msra.mxu0 0.0
    %478 = vmatpush.msra.mxu0 0.0
    %479 = vmatpush.msra.mxu0 0.0
    %480 = vmatpush.msra.mxu0 0.0
    %481 = vmatpush.msra.mxu0 0.0
    %482 = vmatpush.msra.mxu0 0.0
    %483 = vmatpush.msra.mxu0 0.0
    %484 = vmatpush.msra.mxu0 %v350
    %485 = vmatpush.msra.mxu0 %v349
    %486 = vmatmul.f32.gmra.mxu0 %v465
    %v487 = vpop.f32.mrf.mxu0
    %v488 = vadd.f32 %v459, %v487
    %489 = vmatmul.f32.gmra.mxu0 %v468
    %v490 = vpop.f32.mrf.mxu0
    %v491 = vadd.f32 %v462, %v490
    %492 = vdwg.mxu0
    %v494 = vperm.slane %v156, 0
    %v496 = vmul.f32 %v258, %v494
    %v497 = vmul.f32 %v259, %v494
    %v499 = vsel %vm88, %v496, 0
    %v502 = vsel %vm88, %v497, 0
    %504 = vmatpush.xpose.msra.mxu0 0.0
    %505 = vmatpush.xpose.msra.mxu0 0.0
    %506 = vmatpush.xpose.msra.mxu0 0.0
    %507 = vmatpush.xpose.msra.mxu0 0.0
    %508 = vmatpush.xpose.msra.mxu0 0.0
    %509 = vmatpush.xpose.msra.mxu0 0.0
    %510 = vmatpush.xpose.msra.mxu0 0.0
    %511 = vmatpush.xpose.msra.mxu0 0.0
    %512 = vmatpush.xpose.msra.mxu0 0.0
    %513 = vmatpush.xpose.msra.mxu0 0.0
    %514 = vmatpush.xpose.msra.mxu0 0.0
    %515 = vmatpush.xpose.msra.mxu0 0.0
    %516 = vmatpush.xpose.msra.mxu0 0.0
    %517 = vmatpush.xpose.msra.mxu0 0.0
    %518 = vmatpush.xpose.msra.mxu0 %v275
    %519 = vmatpush.xpose.msra.mxu0 %v272
    %520 = vmatmul.f32.gmra.mxu0 %v499
    %v521 = vpop.f32.mrf.mxu0
    %v522 = vadd.f32 %v150, %v521
    %523 = vmatmul.f32.gmra.mxu0 %v502
    %v524 = vpop.f32.mrf.mxu0
    %v525 = vadd.f32 %v151, %v524
    %526 = vdwg.mxu0
    %v527 = vsel %vm300, %v522, -inf
    %528 = vmax.xlane.f32.xlu0 %v527
    %v529 = vpop.xlane.xlu0 %528
    %v530 = vsel %vm300, %v525, -inf
    %531 = vmax.xlane.f32.xlu0 %v530
    %v532 = vpop.xlane.xlu0 %531
    %v533 = vsub.f32 %v522, %v529
    %v534 = vsub.f32 %v525, %v532
    %v535 = vmul.f32 %v533, 1.442695
    %v536 = vpow.pop %v535
    %v537 = vmul.f32 %v534, 1.442695
    %v538 = vpow.pop %v537
    %v539 = vsel %vm300, %v536, 0.0
    %540 = vadd.xlane.f32.xlu0 %v539
    %v541 = vpop.xlane.xlu0 %540
    %v542 = vsel %vm300, %v538, 0.0
    %543 = vadd.xlane.f32.xlu0 %v542
    %v544 = vpop.xlane.xlu0 %543
    %v545 = vrcp.pop %v541
    %v546 = vmul.f32 %v541, %v545
    %v547 = vsub.f32 1.0, %v546
    %v548 = vmul.f32 %v545, %v547
    %v549 = vadd.f32 %v545, %v548
    %vm550 = vweird.f32 %v541
    %vm551 = vweird.f32 %v545
    %vm552 = vmor %vm550, %vm551
    %v553 = vsel %vm552, %v545, %v549
    %v554 = vand.u32 2147483647, %v541
    %vm555 = vcmp.eq.f32.partialorder %v554, 8.507059e+37
    %v556 = vand.u32 %v541, 2147483648
    %v557 = vor.u32 1.1754944e-38, %v556
    %v558 = vsel %vm555, %v557, %v553
    %v559 = vmul.f32 %v536, %v558
    %v560 = vrcp.pop %v544
    %v561 = vmul.f32 %v544, %v560
    %v562 = vsub.f32 1.0, %v561
    %v563 = vmul.f32 %v560, %v562
    %v564 = vadd.f32 %v560, %v563
    %vm565 = vweird.f32 %v544
    %vm566 = vweird.f32 %v560
    %vm567 = vmor %vm565, %vm566
    %v568 = vsel %vm567, %v560, %v564
    %v569 = vand.u32 2147483647, %v544
    %vm570 = vcmp.eq.f32.partialorder %v569, 8.507059e+37
    %v571 = vand.u32 %v544, 2147483648
    %v572 = vor.u32 1.1754944e-38, %v571
    %v573 = vsel %vm570, %v572, %v568
    %v574 = vmul.f32 %v538, %v573
    %v575 = vmul.f32 %v253, %v494
    %v576 = vmul.f32 %v256, %v494
    %v578 = vsel %vm300, %v559, 0
    %v581 = vsel %vm300, %v574, 0
    %583 = vmatpush.msra.mxu0 0.0
    %584 = vmatpush.msra.mxu0 0.0
    %585 = vmatpush.msra.mxu0 0.0
    %586 = vmatpush.msra.mxu0 0.0
    %587 = vmatpush.msra.mxu0 0.0
    %588 = vmatpush.msra.mxu0 0.0
    %589 = vmatpush.msra.mxu0 0.0
    %590 = vmatpush.msra.mxu0 0.0
    %591 = vmatpush.msra.mxu0 0.0
    %592 = vmatpush.msra.mxu0 0.0
    %593 = vmatpush.msra.mxu0 0.0
    %594 = vmatpush.msra.mxu0 0.0
    %595 = vmatpush.msra.mxu0 0.0
    %596 = vmatpush.msra.mxu0 0.0
    %597 = vmatpush.msra.mxu0 %v576
    %598 = vmatpush.msra.mxu0 %v575
    %599 = vmatmul.f32.gmra.mxu0 %v578
    %v600 = vpop.f32.mrf.mxu0
    %v601 = vadd.f32 0.0, %v600
    %602 = vmatmul.f32.gmra.mxu0 %v581
    %v603 = vpop.f32.mrf.mxu0
    %v604 = vadd.f32 0.0, %v603
    %605 = vdwg.mxu0
    %v606 = vadd.f32 %v488, %v601
    %v607 = vadd.f32 %v491, %v604
    %v609 = vperm.slane %v158, 0
    %v611 = vmul.f32 %v258, %v609
    %v612 = vmul.f32 %v259, %v609
    %v614 = vsel %vm88, %v611, 0
    %v617 = vsel %vm88, %v612, 0
    %619 = vmatpush.xpose.msra.mxu0 0.0
    %620 = vmatpush.xpose.msra.mxu0 0.0
    %621 = vmatpush.xpose.msra.mxu0 0.0
    %622 = vmatpush.xpose.msra.mxu0 0.0
    %623 = vmatpush.xpose.msra.mxu0 0.0
    %624 = vmatpush.xpose.msra.mxu0 0.0
    %625 = vmatpush.xpose.msra.mxu0 0.0
    %626 = vmatpush.xpose.msra.mxu0 0.0
    %627 = vmatpush.xpose.msra.mxu0 0.0
    %628 = vmatpush.xpose.msra.mxu0 0.0
    %629 = vmatpush.xpose.msra.mxu0 0.0
    %630 = vmatpush.xpose.msra.mxu0 0.0
    %631 = vmatpush.xpose.msra.mxu0 0.0
    %632 = vmatpush.xpose.msra.mxu0 0.0
    %633 = vmatpush.xpose.msra.mxu0 %v275
    %634 = vmatpush.xpose.msra.mxu0 %v272
    %635 = vmatmul.f32.gmra.mxu0 %v614
    %v636 = vpop.f32.mrf.mxu0
    %v637 = vadd.f32 %v150, %v636
    %638 = vmatmul.f32.gmra.mxu0 %v617
    %v639 = vpop.f32.mrf.mxu0
    %v640 = vadd.f32 %v151, %v639
    %641 = vdwg.mxu0
    %v642 = vsel %vm300, %v637, -inf
    %643 = vmax.xlane.f32.xlu0 %v642
    %v644 = vpop.xlane.xlu0 %643
    %v645 = vsel %vm300, %v640, -inf
    %646 = vmax.xlane.f32.xlu0 %v645
    %v647 = vpop.xlane.xlu0 %646
    %v648 = vsub.f32 %v637, %v644
    %v649 = vsub.f32 %v640, %v647
    %v650 = vmul.f32 %v648, 1.442695
    %v651 = vpow.pop %v650
    %v652 = vmul.f32 %v649, 1.442695
    %v653 = vpow.pop %v652
    %v654 = vsel %vm300, %v651, 0.0
    %655 = vadd.xlane.f32.xlu0 %v654
    %v656 = vpop.xlane.xlu0 %655
    %v657 = vsel %vm300, %v653, 0.0
    %658 = vadd.xlane.f32.xlu0 %v657
    %v659 = vpop.xlane.xlu0 %658
    %v660 = vrcp.pop %v656
    %v661 = vmul.f32 %v656, %v660
    %v662 = vsub.f32 1.0, %v661
    %v663 = vmul.f32 %v660, %v662
    %v664 = vadd.f32 %v660, %v663
    %vm665 = vweird.f32 %v656
    %vm666 = vweird.f32 %v660
    %vm667 = vmor %vm665, %vm666
    %v668 = vsel %vm667, %v660, %v664
    %v669 = vand.u32 2147483647, %v656
    %vm670 = vcmp.eq.f32.partialorder %v669, 8.507059e+37
    %v671 = vand.u32 %v656, 2147483648
    %v672 = vor.u32 1.1754944e-38, %v671
    %v673 = vsel %vm670, %v672, %v668
    %v674 = vmul.f32 %v651, %v673
    %v675 = vrcp.pop %v659
    %v676 = vmul.f32 %v659, %v675
    %v677 = vsub.f32 1.0, %v676
    %v678 = vmul.f32 %v675, %v677
    %v679 = vadd.f32 %v675, %v678
    %vm680 = vweird.f32 %v659
    %vm681 = vweird.f32 %v675
    %vm682 = vmor %vm680, %vm681
    %v683 = vsel %vm682, %v675, %v679
    %v684 = vand.u32 2147483647, %v659
    %vm685 = vcmp.eq.f32.partialorder %v684, 8.507059e+37
    %v686 = vand.u32 %v659, 2147483648
    %v687 = vor.u32 1.1754944e-38, %v686
    %v688 = vsel %vm685, %v687, %v683
    %v689 = vmul.f32 %v653, %v688
    %v690 = vmul.f32 %v253, %v609
    %v691 = vmul.f32 %v256, %v609
    %v693 = vsel %vm300, %v674, 0
    %v696 = vsel %vm300, %v689, 0
    %698 = vmatpush.msra.mxu0 0.0
    %699 = vmatpush.msra.mxu0 0.0
    %700 = vmatpush.msra.mxu0 0.0
    %701 = vmatpush.msra.mxu0 0.0
    %702 = vmatpush.msra.mxu0 0.0
    %703 = vmatpush.msra.mxu0 0.0
    %704 = vmatpush.msra.mxu0 0.0
    %705 = vmatpush.msra.mxu0 0.0
    %706 = vmatpush.msra.mxu0 0.0
    %707 = vmatpush.msra.mxu0 0.0
    %708 = vmatpush.msra.mxu0 0.0
    %709 = vmatpush.msra.mxu0 0.0
    %710 = vmatpush.msra.mxu0 0.0
    %711 = vmatpush.msra.mxu0 0.0
    %712 = vmatpush.msra.mxu0 %v691
    %713 = vmatpush.msra.mxu0 %v690
    %714 = vmatmul.f32.gmra.mxu0 %v693
    %v715 = vpop.f32.mrf.mxu0
    %v716 = vadd.f32 0.0, %v715
    %717 = vmatmul.f32.gmra.mxu0 %v696
    %v718 = vpop.f32.mrf.mxu0
    %v719 = vadd.f32 0.0, %v718
    %720 = vdwg.mxu0
    %v721 = vadd.f32 %v606, %v716
    %v722 = vadd.f32 %v607, %v719
    %v723 = vld [vmem:[%s12] sm:$0xff]
    %v724 = vld [vmem:[%s12 + $0x8] sm:$0xff]
    %v725 = vld [vmem:[%s12 + $0x10] sm:$0xff]
    %v726 = vld [vmem:[%s12 + $0x18] sm:$0xff]
    %v727 = vld [vmem:[%s13] sm:$0x1]
    %v729 = vperm.slane %v727, 0
    %v732 = vsel %vm88, %v721, 0
    %v735 = vsel %vm88, %v722, 0
    %737 = vmatpush.msra.mxu0 0.0
    %738 = vmatpush.msra.mxu0 0.0
    %739 = vmatpush.msra.mxu0 0.0
    %740 = vmatpush.msra.mxu0 0.0
    %741 = vmatpush.msra.mxu0 0.0
    %742 = vmatpush.msra.mxu0 0.0
    %743 = vmatpush.msra.mxu0 0.0
    %744 = vmatpush.msra.mxu0 0.0
    %745 = vmatpush.msra.mxu0 0.0
    %746 = vmatpush.msra.mxu0 0.0
    %747 = vmatpush.msra.mxu0 0.0
    %748 = vmatpush.msra.mxu0 0.0
    %749 = vmatpush.msra.mxu0 %v726
    %750 = vmatpush.msra.mxu0 %v725
    %751 = vmatpush.msra.mxu0 %v724
    %752 = vmatpush.msra.mxu0 %v723
    %753 = vmatmul.f32.gmra.mxu0 %v732
    %v754 = vpop.f32.mrf.mxu0
    %v755 = vadd.f32 %v729, %v754
    %756 = vmatmul.f32.gmra.mxu0 %v735
    %v757 = vpop.f32.mrf.mxu0
    %v758 = vadd.f32 %v729, %v757
    %759 = vdwg.mxu0
    %v760 = vadd.f32 %v148, %v755
    %v761 = vadd.f32 %v149, %v758
    %v762 = vld [vmem:[%s14] sm:$0x1]
    %v763 = vld [vmem:[%s15] sm:$0x1]
    %v764 = vsel %vm88, %v760, 0.0
    %765 = vadd.xlane.f32.xlu0 %v764
    %v766 = vpop.xlane.xlu0 %765
    %v767 = vsel %vm88, %v761, 0.0
    %768 = vadd.xlane.f32.xlu0 %v767
    %v769 = vpop.xlane.xlu0 %768
    %v770 = vmul.f32 %v766, %v101
    %v771 = vmul.f32 %v769, %v101
    %v772 = vsub.f32 %v760, %v770
    %v773 = vsub.f32 %v761, %v771
    %v774 = vmul.f32 %v772, %v772
    %v775 = vmul.f32 %v773, %v773
    %v776 = vsel %vm88, %v774, 0.0
    %777 = vadd.xlane.f32.xlu0 %v776
    %v778 = vpop.xlane.xlu0 %777
    %v779 = vsel %vm88, %v775, 0.0
    %780 = vadd.xlane.f32.xlu0 %v779
    %v781 = vpop.xlane.xlu0 %780
    %v782 = vmul.f32 %v778, %v101
    %v783 = vmul.f32 %v781, %v101
    %v784 = vadd.f32 %v782, 1e-12
    %v785 = vadd.f32 %v783, 1e-12
    %v786 = vrsqrt.pop %v784
    %v787 = vmul.f32 %v786, %v784
    %v788 = vmul.f32 %v787, %v786
    %v789 = vmul.f32 0.5, %v788
    %v790 = vsub.f32 1.5, %v789
    %v791 = vmul.f32 %v786, %v790
    %vm792 = vweird.f32 %v784
    %vm793 = vweird.f32 %v786
    %vm794 = vmor %vm792, %vm793
    %v795 = vsel %vm794, %v786, %v791
    %v796 = vrsqrt.pop %v785
    %v797 = vmul.f32 %v796, %v785
    %v798 = vmul.f32 %v797, %v796
    %v799 = vmul.f32 0.5, %v798
    %v800 = vsub.f32 1.5, %v799
    %v801 = vmul.f32 %v796, %v800
    %vm802 = vweird.f32 %v785
    %vm803 = vweird.f32 %v796
    %vm804 = vmor %vm802, %vm803
    %v805 = vsel %vm804, %v796, %v801
    %v806 = vmul.f32 %v772, %v795
    %v807 = vmul.f32 %v773, %v805
    %v809 = vperm.slane %v762, 0
    %v811 = vmul.f32 %v806, %v809
    %v812 = vmul.f32 %v807, %v809
    %v814 = vperm.slane %v763, 0
    %v816 = vadd.f32 %v811, %v814
    %v817 = vadd.f32 %v812, %v814
    %v818 = vld [vmem:[%s16] sm:$0xff]
    %v819 = vld [vmem:[%s16 + $0x8] sm:$0xff]
    %v820 = vld [vmem:[%s16 + $0x10] sm:$0xff]
    %v821 = vld [vmem:[%s16 + $0x18] sm:$0xff]
    %v822 = vld [vmem:[%s17] sm:$0x1]
    %v824 = vperm.slane %v822, 0
    %v827 = vsel %vm88, %v816, 0
    %v830 = vsel %vm88, %v817, 0
    %832 = vmatpush.msra.mxu0 0.0
    %833 = vmatpush.msra.mxu0 0.0
    %834 = vmatpush.msra.mxu0 0.0
    %835 = vmatpush.msra.mxu0 0.0
    %836 = vmatpush.msra.mxu0 0.0
    %837 = vmatpush.msra.mxu0 0.0
    %838 = vmatpush.msra.mxu0 0.0
    %839 = vmatpush.msra.mxu0 0.0
    %840 = vmatpush.msra.mxu0 0.0
    %841 = vmatpush.msra.mxu0 0.0
    %842 = vmatpush.msra.mxu0 0.0
    %843 = vmatpush.msra.mxu0 0.0
    %844 = vmatpush.msra.mxu0 %v821
    %845 = vmatpush.msra.mxu0 %v820
    %846 = vmatpush.msra.mxu0 %v819
    %847 = vmatpush.msra.mxu0 %v818
    %848 = vmatmul.f32.gmra.mxu0 %v827
    %v849 = vpop.f32.mrf.mxu0
    %v850 = vadd.f32 %v824, %v849
    %851 = vmatmul.f32.gmra.mxu0 %v830
    %v852 = vpop.f32.mrf.mxu0
    %v853 = vadd.f32 %v824, %v852
    %854 = vdwg.mxu0
    %v855 = vmul.f32 %v850, 0.5
    %v856 = vmul.f32 %v853, 0.5
    %v857 = vmul.f32 %v850, 0.044715
    %v858 = vmul.f32 %v853, 0.044715
    %v859 = vmul.f32 %v857, %v850
    %v860 = vmul.f32 %v858, %v853
    %v861 = vmul.f32 %v859, %v850
    %v862 = vmul.f32 %v860, %v853
    %v863 = vadd.f32 %v850, %v861
    %v864 = vadd.f32 %v853, %v862
    %v865 = vmul.f32 %v863, 0.7978846
    %v866 = vmul.f32 %v864, 0.7978846
    %v867 = vtanh.pop %v865
    %v868 = vtanh.pop %v866
    %v869 = vadd.f32 %v867, 1.0
    %v870 = vadd.f32 %v868, 1.0
    %v871 = vmul.f32 %v855, %v869
    %v872 = vmul.f32 %v856, %v870
    %v873 = vld [vmem:[%s18] sm:$0xff]
    %v874 = vld [vmem:[%s18 + $0x8] sm:$0xff]
    %v875 = vld [vmem:[%s18 + $0x10] sm:$0xff]
    %v876 = vld [vmem:[%s18 + $0x18] sm:$0xff]
    %v877 = vld [vmem:[%s18 + $0x20] sm:$0xff]
    %v878 = vld [vmem:[%s18 + $0x28] sm:$0xff]
    %v879 = vld [vmem:[%s18 + $0x30] sm:$0xff]
    %v880 = vld [vmem:[%s18 + $0x38] sm:$0xff]
    %v881 = vld [vmem:[%s19] sm:$0x1]
    %v883 = vperm.slane %v881, 0
    %vm885 = vcmask 523264
    %v887 = vsel %vm885, %v871, 0
    %v890 = vsel %vm885, %v872, 0
    %892 = vmatpush.msra.mxu0 0.0
    %893 = vmatpush.msra.mxu0 0.0
    %894 = vmatpush.msra.mxu0 0.0
    %895 = vmatpush.msra.mxu0 0.0
    %896 = vmatpush.msra.mxu0 0.0
    %897 = vmatpush.msra.mxu0 0.0
    %898 = vmatpush.msra.mxu0 0.0
    %899 = vmatpush.msra.mxu0 0.0
    %900 = vmatpush.msra.mxu0 %v880
    %901 = vmatpush.msra.mxu0 %v879
    %902 = vmatpush.msra.mxu0 %v878
    %903 = vmatpush.msra.mxu0 %v877
    %904 = vmatpush.msra.mxu0 %v876
    %905 = vmatpush.msra.mxu0 %v875
    %906 = vmatpush.msra.mxu0 %v874
    %907 = vmatpush.msra.mxu0 %v873
    %908 = vmatmul.f32.gmra.mxu0 %v887
    %v909 = vpop.f32.mrf.mxu0
    %v910 = vadd.f32 %v883, %v909
    %911 = vmatmul.f32.gmra.mxu0 %v890
    %v912 = vpop.f32.mrf.mxu0
    %v913 = vadd.f32 %v883, %v912
    %914 = vdwg.mxu0
    %v915 = vadd.f32 %v816, %v910
    %v916 = vadd.f32 %v817, %v913
    %v917 = vld [vmem:[%s20] sm:$0x1]
    %v918 = vld [vmem:[%s21] sm:$0x1]
    %v919 = vsel %vm88, %v915, 0.0
    %920 = vadd.xlane.f32.xlu0 %v919
    %v921 = vpop.xlane.xlu0 %920
    %v922 = vsel %vm88, %v916, 0.0
    %923 = vadd.xlane.f32.xlu0 %v922
    %v924 = vpop.xlane.xlu0 %923
    %v925 = vmul.f32 %v921, %v101
    %v926 = vmul.f32 %v924, %v101
    %v927 = vsub.f32 %v915, %v925
    %v928 = vsub.f32 %v916, %v926
    %v929 = vmul.f32 %v927, %v927
    %v930 = vmul.f32 %v928, %v928
    %v931 = vsel %vm88, %v929, 0.0
    %932 = vadd.xlane.f32.xlu0 %v931
    %v933 = vpop.xlane.xlu0 %932
    %v934 = vsel %vm88, %v930, 0.0
    %935 = vadd.xlane.f32.xlu0 %v934
    %v936 = vpop.xlane.xlu0 %935
    %v937 = vmul.f32 %v933, %v101
    %v938 = vmul.f32 %v936, %v101
    %v939 = vadd.f32 %v937, 1e-12
    %v940 = vadd.f32 %v938, 1e-12
    %v941 = vrsqrt.pop %v939
    %v942 = vmul.f32 %v941, %v939
    %v943 = vmul.f32 %v942, %v941
    %v944 = vmul.f32 0.5, %v943
    %v945 = vsub.f32 1.5, %v944
    %v946 = vmul.f32 %v941, %v945
    %vm947 = vweird.f32 %v939
    %vm948 = vweird.f32 %v941
    %vm949 = vmor %vm947, %vm948
    %v950 = vsel %vm949, %v941, %v946
    %v951 = vrsqrt.pop %v940
    %v952 = vmul.f32 %v951, %v940
    %v953 = vmul.f32 %v952, %v951
    %v954 = vmul.f32 0.5, %v953
    %v955 = vsub.f32 1.5, %v954
    %v956 = vmul.f32 %v951, %v955
    %vm957 = vweird.f32 %v940
    %vm958 = vweird.f32 %v951
    %vm959 = vmor %vm957, %vm958
    %v960 = vsel %vm959, %v951, %v956
    %v961 = vmul.f32 %v927, %v950
    %v962 = vmul.f32 %v928, %v960
    %v964 = vperm.slane %v917, 0
    %v966 = vmul.f32 %v961, %v964
    %v967 = vmul.f32 %v962, %v964
    %v969 = vperm.slane %v918, 0
    %v971 = vadd.f32 %v966, %v969
    %v972 = vadd.f32 %v967, %v969
    %s973 = scalar_lea.vmem %s6, 32
    %v974 = vld [vmem:[%s973] sm:$0xff]
    %v975 = vld [vmem:[%s973 + $0x8] sm:$0xff]
    %v976 = vld [vmem:[%s973 + $0x10] sm:$0xff]
    %v977 = vld [vmem:[%s973 + $0x18] sm:$0xff]
    %s978 = scalar_lea.vmem %s7, 1
    %v979 = vld [vmem:[%s978] sm:$0x1]
    %v981 = vperm.slane %v979, 0
    %v984 = vsel %vm88, %v971, 0
    %v987 = vsel %vm88, %v972, 0
    %989 = vmatpush.msra.mxu0 0.0
    %990 = vmatpush.msra.mxu0 0.0
    %991 = vmatpush.msra.mxu0 0.0
    %992 = vmatpush.msra.mxu0 0.0
    %993 = vmatpush.msra.mxu0 0.0
    %994 = vmatpush.msra.mxu0 0.0
    %995 = vmatpush.msra.mxu0 0.0
    %996 = vmatpush.msra.mxu0 0.0
    %997 = vmatpush.msra.mxu0 0.0
    %998 = vmatpush.msra.mxu0 0.0
    %999 = vmatpush.msra.mxu0 0.0
    %1000 = vmatpush.msra.mxu0 0.0
    %1001 = vmatpush.msra.mxu0 %v977
    %1002 = vmatpush.msra.mxu0 %v976
    %1003 = vmatpush.msra.mxu0 %v975
    %1004 = vmatpush.msra.mxu0 %v974
    %1005 = vmatmul.f32.gmra.mxu0 %v984
    %v1006 = vpop.f32.mrf.mxu0
    %v1007 = vadd.f32 %v981, %v1006
    %1008 = vmatmul.f32.gmra.mxu0 %v987
    %v1009 = vpop.f32.mrf.mxu0
    %v1010 = vadd.f32 %v981, %v1009
    %1011 = vdwg.mxu0
    %s1012 = scalar_lea.vmem %s8, 32
    %v1013 = vld [vmem:[%s1012] sm:$0xff]
    %v1014 = vld [vmem:[%s1012 + $0x8] sm:$0xff]
    %v1015 = vld [vmem:[%s1012 + $0x10] sm:$0xff]
    %v1016 = vld [vmem:[%s1012 + $0x18] sm:$0xff]
    %s1017 = scalar_lea.vmem %s9, 1
    %v1018 = vld [vmem:[%s1017] sm:$0x1]
    %v1020 = vperm.slane %v1018, 0
    %1022 = vmatpush.msra.mxu0 0.0
    %1023 = vmatpush.msra.mxu0 0.0
    %1024 = vmatpush.msra.mxu0 0.0
    %1025 = vmatpush.msra.mxu0 0.0
    %1026 = vmatpush.msra.mxu0 0.0
    %1027 = vmatpush.msra.mxu0 0.0
    %1028 = vmatpush.msra.mxu0 0.0
    %1029 = vmatpush.msra.mxu0 0.0
    %1030 = vmatpush.msra.mxu0 0.0
    %1031 = vmatpush.msra.mxu0 0.0
    %1032 = vmatpush.msra.mxu0 0.0
    %1033 = vmatpush.msra.mxu0 0.0
    %1034 = vmatpush.msra.mxu0 %v1016
    %1035 = vmatpush.msra.mxu0 %v1015
    %1036 = vmatpush.msra.mxu0 %v1014
    %1037 = vmatpush.msra.mxu0 %v1013
    %1038 = vmatmul.f32.gmra.mxu0 %v984
    %v1039 = vpop.f32.mrf.mxu0
    %v1040 = vadd.f32 %v1020, %v1039
    %1041 = vmatmul.f32.gmra.mxu0 %v987
    %v1042 = vpop.f32.mrf.mxu0
    %v1043 = vadd.f32 %v1020, %v1042
    %1044 = vdwg.mxu0
    %s1045 = scalar_lea.vmem %s10, 32
    %v1046 = vld [vmem:[%s1045] sm:$0xff]
    %v1047 = vld [vmem:[%s1045 + $0x8] sm:$0xff]
    %v1048 = vld [vmem:[%s1045 + $0x10] sm:$0xff]
    %v1049 = vld [vmem:[%s1045 + $0x18] sm:$0xff]
    %s1050 = scalar_lea.vmem %s11, 1
    %v1051 = vld [vmem:[%s1050] sm:$0x1]
    %v1053 = vperm.slane %v1051, 0
    %1055 = vmatpush.msra.mxu0 0.0
    %1056 = vmatpush.msra.mxu0 0.0
    %1057 = vmatpush.msra.mxu0 0.0
    %1058 = vmatpush.msra.mxu0 0.0
    %1059 = vmatpush.msra.mxu0 0.0
    %1060 = vmatpush.msra.mxu0 0.0
    %1061 = vmatpush.msra.mxu0 0.0
    %1062 = vmatpush.msra.mxu0 0.0
    %1063 = vmatpush.msra.mxu0 0.0
    %1064 = vmatpush.msra.mxu0 0.0
    %1065 = vmatpush.msra.mxu0 0.0
    %1066 = vmatpush.msra.mxu0 0.0
    %1067 = vmatpush.msra.mxu0 %v1049
    %1068 = vmatpush.msra.mxu0 %v1048
    %1069 = vmatpush.msra.mxu0 %v1047
    %1070 = vmatpush.msra.mxu0 %v1046
    %1071 = vmatmul.f32.gmra.mxu0 %v984
    %v1072 = vpop.f32.mrf.mxu0
    %v1073 = vadd.f32 %v1053, %v1072
    %1074 = vmatmul.f32.gmra.mxu0 %v987
    %v1075 = vpop.f32.mrf.mxu0
    %v1076 = vadd.f32 %v1053, %v1075
    %1077 = vdwg.mxu0
    %v1078 = vmul.f32 %v1007, 0.35355338
    %v1079 = vmul.f32 %v1010, 0.35355338
    %v1080 = vmul.f32 %v1078, %v261
    %v1081 = vmul.f32 %v1079, %v261
    %v1083 = vsel %vm88, %v1080, 0
    %v1086 = vsel %vm88, %v1081, 0
    %v1089 = vsel %vm88, %v1040, 0
    %v1092 = vsel %vm88, %v1043, 0
    %1094 = vmatpush.xpose.msra.mxu0 0.0
    %1095 = vmatpush.xpose.msra.mxu0 0.0
    %1096 = vmatpush.xpose.msra.mxu0 0.0
    %1097 = vmatpush.xpose.msra.mxu0 0.0
    %1098 = vmatpush.xpose.msra.mxu0 0.0
    %1099 = vmatpush.xpose.msra.mxu0 0.0
    %1100 = vmatpush.xpose.msra.mxu0 0.0
    %1101 = vmatpush.xpose.msra.mxu0 0.0
    %1102 = vmatpush.xpose.msra.mxu0 0.0
    %1103 = vmatpush.xpose.msra.mxu0 0.0
    %1104 = vmatpush.xpose.msra.mxu0 0.0
    %1105 = vmatpush.xpose.msra.mxu0 0.0
    %1106 = vmatpush.xpose.msra.mxu0 0.0
    %1107 = vmatpush.xpose.msra.mxu0 0.0
    %1108 = vmatpush.xpose.msra.mxu0 %v1092
    %1109 = vmatpush.xpose.msra.mxu0 %v1089
    %1110 = vmatmul.f32.gmra.mxu0 %v1083
    %v1111 = vpop.f32.mrf.mxu0
    %v1112 = vadd.f32 %v150, %v1111
    %1113 = vmatmul.f32.gmra.mxu0 %v1086
    %v1114 = vpop.f32.mrf.mxu0
    %v1115 = vadd.f32 %v151, %v1114
    %1116 = vdwg.mxu0
    %v1117 = vsel %vm300, %v1112, -inf
    %1118 = vmax.xlane.f32.xlu0 %v1117
    %v1119 = vpop.xlane.xlu0 %1118
    %v1120 = vsel %vm300, %v1115, -inf
    %1121 = vmax.xlane.f32.xlu0 %v1120
    %v1122 = vpop.xlane.xlu0 %1121
    %v1123 = vsub.f32 %v1112, %v1119
    %v1124 = vsub.f32 %v1115, %v1122
    %v1125 = vmul.f32 %v1123, 1.442695
    %v1126 = vpow.pop %v1125
    %v1127 = vmul.f32 %v1124, 1.442695
    %v1128 = vpow.pop %v1127
    %v1129 = vsel %vm300, %v1126, 0.0
    %1130 = vadd.xlane.f32.xlu0 %v1129
    %v1131 = vpop.xlane.xlu0 %1130
    %v1132 = vsel %vm300, %v1128, 0.0
    %1133 = vadd.xlane.f32.xlu0 %v1132
    %v1134 = vpop.xlane.xlu0 %1133
    %v1135 = vrcp.pop %v1131
    %v1136 = vmul.f32 %v1131, %v1135
    %v1137 = vsub.f32 1.0, %v1136
    %v1138 = vmul.f32 %v1135, %v1137
    %v1139 = vadd.f32 %v1135, %v1138
    %vm1140 = vweird.f32 %v1131
    %vm1141 = vweird.f32 %v1135
    %vm1142 = vmor %vm1140, %vm1141
    %v1143 = vsel %vm1142, %v1135, %v1139
    %v1144 = vand.u32 2147483647, %v1131
    %vm1145 = vcmp.eq.f32.partialorder %v1144, 8.507059e+37
    %v1146 = vand.u32 %v1131, 2147483648
    %v1147 = vor.u32 1.1754944e-38, %v1146
    %v1148 = vsel %vm1145, %v1147, %v1143
    %v1149 = vmul.f32 %v1126, %v1148
    %v1150 = vrcp.pop %v1134
    %v1151 = vmul.f32 %v1134, %v1150
    %v1152 = vsub.f32 1.0, %v1151
    %v1153 = vmul.f32 %v1150, %v1152
    %v1154 = vadd.f32 %v1150, %v1153
    %vm1155 = vweird.f32 %v1134
    %vm1156 = vweird.f32 %v1150
    %vm1157 = vmor %vm1155, %vm1156
    %v1158 = vsel %vm1157, %v1150, %v1154
    %v1159 = vand.u32 2147483647, %v1134
    %vm1160 = vcmp.eq.f32.partialorder %v1159, 8.507059e+37
    %v1161 = vand.u32 %v1134, 2147483648
    %v1162 = vor.u32 1.1754944e-38, %v1161
    %v1163 = vsel %vm1160, %v1162, %v1158
    %v1164 = vmul.f32 %v1128, %v1163
    %v1165 = vmul.f32 %v1073, %v261
    %v1166 = vmul.f32 %v1076, %v261
    %v1167 = vmul.f32 %v1078, %v352
    %v1168 = vmul.f32 %v1079, %v352
    %v1170 = vsel %vm88, %v1167, 0
    %v1173 = vsel %vm88, %v1168, 0
    %1175 = vmatpush.xpose.msra.mxu0 0.0
    %1176 = vmatpush.xpose.msra.mxu0 0.0
    %1177 = vmatpush.xpose.msra.mxu0 0.0
    %1178 = vmatpush.xpose.msra.mxu0 0.0
    %1179 = vmatpush.xpose.msra.mxu0 0.0
    %1180 = vmatpush.xpose.msra.mxu0 0.0
    %1181 = vmatpush.xpose.msra.mxu0 0.0
    %1182 = vmatpush.xpose.msra.mxu0 0.0
    %1183 = vmatpush.xpose.msra.mxu0 0.0
    %1184 = vmatpush.xpose.msra.mxu0 0.0
    %1185 = vmatpush.xpose.msra.mxu0 0.0
    %1186 = vmatpush.xpose.msra.mxu0 0.0
    %1187 = vmatpush.xpose.msra.mxu0 0.0
    %1188 = vmatpush.xpose.msra.mxu0 0.0
    %1189 = vmatpush.xpose.msra.mxu0 %v1092
    %1190 = vmatpush.xpose.msra.mxu0 %v1089
    %1191 = vmatmul.f32.gmra.mxu0 %v1170
    %v1192 = vpop.f32.mrf.mxu0
    %v1193 = vadd.f32 %v150, %v1192
    %1194 = vmatmul.f32.gmra.mxu0 %v1173
    %v1195 = vpop.f32.mrf.mxu0
    %v1196 = vadd.f32 %v151, %v1195
    %1197 = vdwg.mxu0
    %v1198 = vsel %vm300, %v1193, -inf
    %1199 = vmax.xlane.f32.xlu0 %v1198
    %v1200 = vpop.xlane.xlu0 %1199
    %v1201 = vsel %vm300, %v1196, -inf
    %1202 = vmax.xlane.f32.xlu0 %v1201
    %v1203 = vpop.xlane.xlu0 %1202
    %v1204 = vsub.f32 %v1193, %v1200
    %v1205 = vsub.f32 %v1196, %v1203
    %v1206 = vmul.f32 %v1204, 1.442695
    %v1207 = vpow.pop %v1206
    %v1208 = vmul.f32 %v1205, 1.442695
    %v1209 = vpow.pop %v1208
    %v1210 = vsel %vm300, %v1207, 0.0
    %1211 = vadd.xlane.f32.xlu0 %v1210
    %v1212 = vpop.xlane.xlu0 %1211
    %v1213 = vsel %vm300, %v1209, 0.0
    %1214 = vadd.xlane.f32.xlu0 %v1213
    %v1215 = vpop.xlane.xlu0 %1214
    %v1216 = vrcp.pop %v1212
    %v1217 = vmul.f32 %v1212, %v1216
    %v1218 = vsub.f32 1.0, %v1217
    %v1219 = vmul.f32 %v1216, %v1218
    %v1220 = vadd.f32 %v1216, %v1219
    %vm1221 = vweird.f32 %v1212
    %vm1222 = vweird.f32 %v1216
    %vm1223 = vmor %vm1221, %vm1222
    %v1224 = vsel %vm1223, %v1216, %v1220
    %v1225 = vand.u32 2147483647, %v1212
    %vm1226 = vcmp.eq.f32.partialorder %v1225, 8.507059e+37
    %v1227 = vand.u32 %v1212, 2147483648
    %v1228 = vor.u32 1.1754944e-38, %v1227
    %v1229 = vsel %vm1226, %v1228, %v1224
    %v1230 = vmul.f32 %v1207, %v1229
    %v1231 = vrcp.pop %v1215
    %v1232 = vmul.f32 %v1215, %v1231
    %v1233 = vsub.f32 1.0, %v1232
    %v1234 = vmul.f32 %v1231, %v1233
    %v1235 = vadd.f32 %v1231, %v1234
    %vm1236 = vweird.f32 %v1215
    %vm1237 = vweird.f32 %v1231
    %vm1238 = vmor %vm1236, %vm1237
    %v1239 = vsel %vm1238, %v1231, %v1235
    %v1240 = vand.u32 2147483647, %v1215
    %vm1241 = vcmp.eq.f32.partialorder %v1240, 8.507059e+37
    %v1242 = vand.u32 %v1215, 2147483648
    %v1243 = vor.u32 1.1754944e-38, %v1242
    %v1244 = vsel %vm1241, %v1243, %v1239
    %v1245 = vmul.f32 %v1209, %v1244
    %v1246 = vmul.f32 %v1073, %v352
    %v1247 = vmul.f32 %v1076, %v352
    %v1249 = vsel %vm300, %v1230, 0
    %v1252 = vsel %vm300, %v1245, 0
    %1254 = vmatpush.msra.mxu0 0.0
    %1255 = vmatpush.msra.mxu0 0.0
    %1256 = vmatpush.msra.mxu0 0.0
    %1257 = vmatpush.msra.mxu0 0.0
    %1258 = vmatpush.msra.mxu0 0.0
    %1259 = vmatpush.msra.mxu0 0.0
    %1260 = vmatpush.msra.mxu0 0.0
    %1261 = vmatpush.msra.mxu0 0.0
    %1262 = vmatpush.msra.mxu0 0.0
    %1263 = vmatpush.msra.mxu0 0.0
    %1264 = vmatpush.msra.mxu0 0.0
    %1265 = vmatpush.msra.mxu0 0.0
    %1266 = vmatpush.msra.mxu0 0.0
    %1267 = vmatpush.msra.mxu0 0.0
    %1268 = vmatpush.msra.mxu0 %v1247
    %1269 = vmatpush.msra.mxu0 %v1246
    %1270 = vmatmul.f32.gmra.mxu0 %v1249
    %v1271 = vpop.f32.mrf.mxu0
    %v1272 = vadd.f32 0.0, %v1271
    %1273 = vmatmul.f32.gmra.mxu0 %v1252
    %v1274 = vpop.f32.mrf.mxu0
    %v1275 = vadd.f32 0.0, %v1274
    %1276 = vdwg.mxu0
    %v1278 = vsel %vm300, %v1149, 0
    %v1281 = vsel %vm300, %v1164, 0
    %1283 = vmatpush.msra.mxu0 0.0
    %1284 = vmatpush.msra.mxu0 0.0
    %1285 = vmatpush.msra.mxu0 0.0
    %1286 = vmatpush.msra.mxu0 0.0
    %1287 = vmatpush.msra.mxu0 0.0
    %1288 = vmatpush.msra.mxu0 0.0
    %1289 = vmatpush.msra.mxu0 0.0
    %1290 = vmatpush.msra.mxu0 0.0
    %1291 = vmatpush.msra.mxu0 0.0
    %1292 = vmatpush.msra.mxu0 0.0
    %1293 = vmatpush.msra.mxu0 0.0
    %1294 = vmatpush.msra.mxu0 0.0
    %1295 = vmatpush.msra.mxu0 0.0
    %1296 = vmatpush.msra.mxu0 0.0
    %1297 = vmatpush.msra.mxu0 %v1166
    %1298 = vmatpush.msra.mxu0 %v1165
    %1299 = vmatmul.f32.gmra.mxu0 %v1278
    %v1300 = vpop.f32.mrf.mxu0
    %v1301 = vadd.f32 %v1272, %v1300
    %1302 = vmatmul.f32.gmra.mxu0 %v1281
    %v1303 = vpop.f32.mrf.mxu0
    %v1304 = vadd.f32 %v1275, %v1303
    %1305 = vdwg.mxu0
    %v1306 = vmul.f32 %v1078, %v494
    %v1307 = vmul.f32 %v1079, %v494
    %v1309 = vsel %vm88, %v1306, 0
    %v1312 = vsel %vm88, %v1307, 0
    %1314 = vmatpush.xpose.msra.mxu0 0.0
    %1315 = vmatpush.xpose.msra.mxu0 0.0
    %1316 = vmatpush.xpose.msra.mxu0 0.0
    %1317 = vmatpush.xpose.msra.mxu0 0.0
    %1318 = vmatpush.xpose.msra.mxu0 0.0
    %1319 = vmatpush.xpose.msra.mxu0 0.0
    %1320 = vmatpush.xpose.msra.mxu0 0.0
    %1321 = vmatpush.xpose.msra.mxu0 0.0
    %1322 = vmatpush.xpose.msra.mxu0 0.0
    %1323 = vmatpush.xpose.msra.mxu0 0.0
    %1324 = vmatpush.xpose.msra.mxu0 0.0
    %1325 = vmatpush.xpose.msra.mxu0 0.0
    %1326 = vmatpush.xpose.msra.mxu0 0.0
    %1327 = vmatpush.xpose.msra.mxu0 0.0
    %1328 = vmatpush.xpose.msra.mxu0 %v1092
    %1329 = vmatpush.xpose.msra.mxu0 %v1089
    %1330 = vmatmul.f32.gmra.mxu0 %v1309
    %v1331 = vpop.f32.mrf.mxu0
    %v1332 = vadd.f32 %v150, %v1331
    %1333 = vmatmul.f32.gmra.mxu0 %v1312
    %v1334 = vpop.f32.mrf.mxu0
    %v1335 = vadd.f32 %v151, %v1334
    %1336 = vdwg.mxu0
    %v1337 = vsel %vm300, %v1332, -inf
    %1338 = vmax.xlane.f32.xlu0 %v1337
    %v1339 = vpop.xlane.xlu0 %1338
    %v1340 = vsel %vm300, %v1335, -inf
    %1341 = vmax.xlane.f32.xlu0 %v1340
    %v1342 = vpop.xlane.xlu0 %1341
    %v1343 = vsub.f32 %v1332, %v1339
    %v1344 = vsub.f32 %v1335, %v1342
    %v1345 = vmul.f32 %v1343, 1.442695
    %v1346 = vpow.pop %v1345
    %v1347 = vmul.f32 %v1344, 1.442695
    %v1348 = vpow.pop %v1347
    %v1349 = vsel %vm300, %v1346, 0.0
    %1350 = vadd.xlane.f32.xlu0 %v1349
    %v1351 = vpop.xlane.xlu0 %1350
    %v1352 = vsel %vm300, %v1348, 0.0
    %1353 = vadd.xlane.f32.xlu0 %v1352
    %v1354 = vpop.xlane.xlu0 %1353
    %v1355 = vrcp.pop %v1351
    %v1356 = vmul.f32 %v1351, %v1355
    %v1357 = vsub.f32 1.0, %v1356
    %v1358 = vmul.f32 %v1355, %v1357
    %v1359 = vadd.f32 %v1355, %v1358
    %vm1360 = vweird.f32 %v1351
    %vm1361 = vweird.f32 %v1355
    %vm1362 = vmor %vm1360, %vm1361
    %v1363 = vsel %vm1362, %v1355, %v1359
    %v1364 = vand.u32 2147483647, %v1351
    %vm1365 = vcmp.eq.f32.partialorder %v1364, 8.507059e+37
    %v1366 = vand.u32 %v1351, 2147483648
    %v1367 = vor.u32 1.1754944e-38, %v1366
    %v1368 = vsel %vm1365, %v1367, %v1363
    %v1369 = vmul.f32 %v1346, %v1368
    %v1370 = vrcp.pop %v1354
    %v1371 = vmul.f32 %v1354, %v1370
    %v1372 = vsub.f32 1.0, %v1371
    %v1373 = vmul.f32 %v1370, %v1372
    %v1374 = vadd.f32 %v1370, %v1373
    %vm1375 = vweird.f32 %v1354
    %vm1376 = vweird.f32 %v1370
    %vm1377 = vmor %vm1375, %vm1376
    %v1378 = vsel %vm1377, %v1370, %v1374
    %v1379 = vand.u32 2147483647, %v1354
    %vm1380 = vcmp.eq.f32.partialorder %v1379, 8.507059e+37
    %v1381 = vand.u32 %v1354, 2147483648
    %v1382 = vor.u32 1.1754944e-38, %v1381
    %v1383 = vsel %vm1380, %v1382, %v1378
    %v1384 = vmul.f32 %v1348, %v1383
    %v1385 = vmul.f32 %v1073, %v494
    %v1386 = vmul.f32 %v1076, %v494
    %v1388 = vsel %vm300, %v1369, 0
    %v1391 = vsel %vm300, %v1384, 0
    %1393 = vmatpush.msra.mxu0 0.0
    %1394 = vmatpush.msra.mxu0 0.0
    %1395 = vmatpush.msra.mxu0 0.0
    %1396 = vmatpush.msra.mxu0 0.0
    %1397 = vmatpush.msra.mxu0 0.0
    %1398 = vmatpush.msra.mxu0 0.0
    %1399 = vmatpush.msra.mxu0 0.0
    %1400 = vmatpush.msra.mxu0 0.0
    %1401 = vmatpush.msra.mxu0 0.0
    %1402 = vmatpush.msra.mxu0 0.0
    %1403 = vmatpush.msra.mxu0 0.0
    %1404 = vmatpush.msra.mxu0 0.0
    %1405 = vmatpush.msra.mxu0 0.0
    %1406 = vmatpush.msra.mxu0 0.0
    %1407 = vmatpush.msra.mxu0 %v1386
    %1408 = vmatpush.msra.mxu0 %v1385
    %1409 = vmatmul.f32.gmra.mxu0 %v1388
    %v1410 = vpop.f32.mrf.mxu0
    %v1411 = vadd.f32 0.0, %v1410
    %1412 = vmatmul.f32.gmra.mxu0 %v1391
    %v1413 = vpop.f32.mrf.mxu0
    %v1414 = vadd.f32 0.0, %v1413
    %1415 = vdwg.mxu0
    %v1416 = vadd.f32 %v1301, %v1411
    %v1417 = vadd.f32 %v1304, %v1414
    %v1418 = vmul.f32 %v1078, %v609
    %v1419 = vmul.f32 %v1079, %v609
    %v1421 = vsel %vm88, %v1418, 0
    %v1424 = vsel %vm88, %v1419, 0
    %1426 = vmatpush.xpose.msra.mxu0 0.0
    %1427 = vmatpush.xpose.msra.mxu0 0.0
    %1428 = vmatpush.xpose.msra.mxu0 0.0
    %1429 = vmatpush.xpose.msra.mxu0 0.0
    %1430 = vmatpush.xpose.msra.mxu0 0.0
    %1431 = vmatpush.xpose.msra.mxu0 0.0
    %1432 = vmatpush.xpose.msra.mxu0 0.0
    %1433 = vmatpush.xpose.msra.mxu0 0.0
    %1434 = vmatpush.xpose.msra.mxu0 0.0
    %1435 = vmatpush.xpose.msra.mxu0 0.0
    %1436 = vmatpush.xpose.msra.mxu0 0.0
    %1437 = vmatpush.xpose.msra.mxu0 0.0
    %1438 = vmatpush.xpose.msra.mxu0 0.0
    %1439 = vmatpush.xpose.msra.mxu0 0.0
    %1440 = vmatpush.xpose.msra.mxu0 %v1092
    %1441 = vmatpush.xpose.msra.mxu0 %v1089
    %1442 = vmatmul.f32.gmra.mxu0 %v1421
    %v1443 = vpop.f32.mrf.mxu0
    %v1444 = vadd.f32 %v150, %v1443
    %1445 = vmatmul.f32.gmra.mxu0 %v1424
    %v1446 = vpop.f32.mrf.mxu0
    %v1447 = vadd.f32 %v151, %v1446
    %1448 = vdwg.mxu0
    %v1449 = vsel %vm300, %v1444, -inf
    %1450 = vmax.xlane.f32.xlu0 %v1449
    %v1451 = vpop.xlane.xlu0 %1450
    %v1452 = vsel %vm300, %v1447, -inf
    %1453 = vmax.xlane.f32.xlu0 %v1452
    %v1454 = vpop.xlane.xlu0 %1453
    %v1455 = vsub.f32 %v1444, %v1451
    %v1456 = vsub.f32 %v1447, %v1454
    %v1457 = vmul.f32 %v1455, 1.442695
    %v1458 = vpow.pop %v1457
    %v1459 = vmul.f32 %v1456, 1.442695
    %v1460 = vpow.pop %v1459
    %v1461 = vsel %vm300, %v1458, 0.0
    %1462 = vadd.xlane.f32.xlu0 %v1461
    %v1463 = vpop.xlane.xlu0 %1462
    %v1464 = vsel %vm300, %v1460, 0.0
    %1465 = vadd.xlane.f32.xlu0 %v1464
    %v1466 = vpop.xlane.xlu0 %1465
    %v1467 = vrcp.pop %v1463
    %v1468 = vmul.f32 %v1463, %v1467
    %v1469 = vsub.f32 1.0, %v1468
    %v1470 = vmul.f32 %v1467, %v1469
    %v1471 = vadd.f32 %v1467, %v1470
    %vm1472 = vweird.f32 %v1463
    %vm1473 = vweird.f32 %v1467
    %vm1474 = vmor %vm1472, %vm1473
    %v1475 = vsel %vm1474, %v1467, %v1471
    %v1476 = vand.u32 2147483647, %v1463
    %vm1477 = vcmp.eq.f32.partialorder %v1476, 8.507059e+37
    %v1478 = vand.u32 %v1463, 2147483648
    %v1479 = vor.u32 1.1754944e-38, %v1478
    %v1480 = vsel %vm1477, %v1479, %v1475
    %v1481 = vmul.f32 %v1458, %v1480
    %v1482 = vrcp.pop %v1466
    %v1483 = vmul.f32 %v1466, %v1482
    %v1484 = vsub.f32 1.0, %v1483
    %v1485 = vmul.f32 %v1482, %v1484
    %v1486 = vadd.f32 %v1482, %v1485
    %vm1487 = vweird.f32 %v1466
    %vm1488 = vweird.f32 %v1482
    %vm1489 = vmor %vm1487, %vm1488
    %v1490 = vsel %vm1489, %v1482, %v1486
    %v1491 = vand.u32 2147483647, %v1466
    %vm1492 = vcmp.eq.f32.partialorder %v1491, 8.507059e+37
    %v1493 = vand.u32 %v1466, 2147483648
    %v1494 = vor.u32 1.1754944e-38, %v1493
    %v1495 = vsel %vm1492, %v1494, %v1490
    %v1496 = vmul.f32 %v1460, %v1495
    %v1497 = vmul.f32 %v1073, %v609
    %v1498 = vmul.f32 %v1076, %v609
    %v1500 = vsel %vm300, %v1481, 0
    %v1503 = vsel %vm300, %v1496, 0
    %1505 = vmatpush.msra.mxu0 0.0
    %1506 = vmatpush.msra.mxu0 0.0
    %1507 = vmatpush.msra.mxu0 0.0
    %1508 = vmatpush.msra.mxu0 0.0
    %1509 = vmatpush.msra.mxu0 0.0
    %1510 = vmatpush.msra.mxu0 0.0
    %1511 = vmatpush.msra.mxu0 0.0
    %1512 = vmatpush.msra.mxu0 0.0
    %1513 = vmatpush.msra.mxu0 0.0
    %1514 = vmatpush.msra.mxu0 0.0
    %1515 = vmatpush.msra.mxu0 0.0
    %1516 = vmatpush.msra.mxu0 0.0
    %1517 = vmatpush.msra.mxu0 0.0
    %1518 = vmatpush.msra.mxu0 0.0
    %1519 = vmatpush.msra.mxu0 %v1498
    %1520 = vmatpush.msra.mxu0 %v1497
    %1521 = vmatmul.f32.gmra.mxu0 %v1500
    %v1522 = vpop.f32.mrf.mxu0
    %v1523 = vadd.f32 0.0, %v1522
    %1524 = vmatmul.f32.gmra.mxu0 %v1503
    %v1525 = vpop.f32.mrf.mxu0
    %v1526 = vadd.f32 0.0, %v1525
    %1527 = vdwg.mxu0
    %v1528 = vadd.f32 %v1416, %v1523
    %v1529 = vadd.f32 %v1417, %v1526
    %s1530 = scalar_lea.vmem %s12, 32
    %v1531 = vld [vmem:[%s1530] sm:$0xff]
    %v1532 = vld [vmem:[%s1530 + $0x8] sm:$0xff]
    %v1533 = vld [vmem:[%s1530 + $0x10] sm:$0xff]
    %v1534 = vld [vmem:[%s1530 + $0x18] sm:$0xff]
    %s1535 = scalar_lea.vmem %s13, 1
    %v1536 = vld [vmem:[%s1535] sm:$0x1]
    %v1538 = vperm.slane %v1536, 0
    %v1541 = vsel %vm88, %v1528, 0
    %v1544 = vsel %vm88, %v1529, 0
    %1546 = vmatpush.msra.mxu0 0.0
    %1547 = vmatpush.msra.mxu0 0.0
    %1548 = vmatpush.msra.mxu0 0.0
    %1549 = vmatpush.msra.mxu0 0.0
    %1550 = vmatpush.msra.mxu0 0.0
    %1551 = vmatpush.msra.mxu0 0.0
    %1552 = vmatpush.msra.mxu0 0.0
    %1553 = vmatpush.msra.mxu0 0.0
    %1554 = vmatpush.msra.mxu0 0.0
    %1555 = vmatpush.msra.mxu0 0.0
    %1556 = vmatpush.msra.mxu0 0.0
    %1557 = vmatpush.msra.mxu0 0.0
    %1558 = vmatpush.msra.mxu0 %v1534
    %1559 = vmatpush.msra.mxu0 %v1533
    %1560 = vmatpush.msra.mxu0 %v1532
    %1561 = vmatpush.msra.mxu0 %v1531
    %1562 = vmatmul.f32.gmra.mxu0 %v1541
    %v1563 = vpop.f32.mrf.mxu0
    %v1564 = vadd.f32 %v1538, %v1563
    %1565 = vmatmul.f32.gmra.mxu0 %v1544
    %v1566 = vpop.f32.mrf.mxu0
    %v1567 = vadd.f32 %v1538, %v1566
    %1568 = vdwg.mxu0
    %v1569 = vadd.f32 %v971, %v1564
    %v1570 = vadd.f32 %v972, %v1567
    %s1571 = scalar_lea.vmem %s14, 1
    %v1572 = vld [vmem:[%s1571] sm:$0x1]
    %s1573 = scalar_lea.vmem %s15, 1
    %v1574 = vld [vmem:[%s1573] sm:$0x1]
    %v1575 = vsel %vm88, %v1569, 0.0
    %1576 = vadd.xlane.f32.xlu0 %v1575
    %v1577 = vpop.xlane.xlu0 %1576
    %v1578 = vsel %vm88, %v1570, 0.0
    %1579 = vadd.xlane.f32.xlu0 %v1578
    %v1580 = vpop.xlane.xlu0 %1579
    %v1581 = vmul.f32 %v1577, %v101
    %v1582 = vmul.f32 %v1580, %v101
    %v1583 = vsub.f32 %v1569, %v1581
    %v1584 = vsub.f32 %v1570, %v1582
    %v1585 = vmul.f32 %v1583, %v1583
    %v1586 = vmul.f32 %v1584, %v1584
    %v1587 = vsel %vm88, %v1585, 0.0
    %1588 = vadd.xlane.f32.xlu0 %v1587
    %v1589 = vpop.xlane.xlu0 %1588
    %v1590 = vsel %vm88, %v1586, 0.0
    %1591 = vadd.xlane.f32.xlu0 %v1590
    %v1592 = vpop.xlane.xlu0 %1591
    %v1593 = vmul.f32 %v1589, %v101
    %v1594 = vmul.f32 %v1592, %v101
    %v1595 = vadd.f32 %v1593, 1e-12
    %v1596 = vadd.f32 %v1594, 1e-12
    %v1597 = vrsqrt.pop %v1595
    %v1598 = vmul.f32 %v1597, %v1595
    %v1599 = vmul.f32 %v1598, %v1597
    %v1600 = vmul.f32 0.5, %v1599
    %v1601 = vsub.f32 1.5, %v1600
    %v1602 = vmul.f32 %v1597, %v1601
    %vm1603 = vweird.f32 %v1595
    %vm1604 = vweird.f32 %v1597
    %vm1605 = vmor %vm1603, %vm1604
    %v1606 = vsel %vm1605, %v1597, %v1602
    %v1607 = vrsqrt.pop %v1596
    %v1608 = vmul.f32 %v1607, %v1596
    %v1609 = vmul.f32 %v1608, %v1607
    %v1610 = vmul.f32 0.5, %v1609
    %v1611 = vsub.f32 1.5, %v1610
    %v1612 = vmul.f32 %v1607, %v1611
    %vm1613 = vweird.f32 %v1596
    %vm1614 = vweird.f32 %v1607
    %vm1615 = vmor %vm1613, %vm1614
    %v1616 = vsel %vm1615, %v1607, %v1612
    %v1617 = vmul.f32 %v1583, %v1606
    %v1618 = vmul.f32 %v1584, %v1616
    %v1620 = vperm.slane %v1572, 0
    %v1622 = vmul.f32 %v1617, %v1620
    %v1623 = vmul.f32 %v1618, %v1620
    %v1625 = vperm.slane %v1574, 0
    %v1627 = vadd.f32 %v1622, %v1625
    %v1628 = vadd.f32 %v1623, %v1625
    %s1629 = scalar_lea.vmem %s16, 32
    %v1630 = vld [vmem:[%s1629] sm:$0xff]
    %v1631 = vld [vmem:[%s1629 + $0x8] sm:$0xff]
    %v1632 = vld [vmem:[%s1629 + $0x10] sm:$0xff]
    %v1633 = vld [vmem:[%s1629 + $0x18] sm:$0xff]
    %s1634 = scalar_lea.vmem %s17, 1
    %v1635 = vld [vmem:[%s1634] sm:$0x1]
    %v1637 = vperm.slane %v1635, 0
    %v1640 = vsel %vm88, %v1627, 0
    %v1643 = vsel %vm88, %v1628, 0
    %1645 = vmatpush.msra.mxu0 0.0
    %1646 = vmatpush.msra.mxu0 0.0
    %1647 = vmatpush.msra.mxu0 0.0
    %1648 = vmatpush.msra.mxu0 0.0
    %1649 = vmatpush.msra.mxu0 0.0
    %1650 = vmatpush.msra.mxu0 0.0
    %1651 = vmatpush.msra.mxu0 0.0
    %1652 = vmatpush.msra.mxu0 0.0
    %1653 = vmatpush.msra.mxu0 0.0
    %1654 = vmatpush.msra.mxu0 0.0
    %1655 = vmatpush.msra.mxu0 0.0
    %1656 = vmatpush.msra.mxu0 0.0
    %1657 = vmatpush.msra.mxu0 %v1633
    %1658 = vmatpush.msra.mxu0 %v1632
    %1659 = vmatpush.msra.mxu0 %v1631
    %1660 = vmatpush.msra.mxu0 %v1630
    %1661 = vmatmul.f32.gmra.mxu0 %v1640
    %v1662 = vpop.f32.mrf.mxu0
    %v1663 = vadd.f32 %v1637, %v1662
    %1664 = vmatmul.f32.gmra.mxu0 %v1643
    %v1665 = vpop.f32.mrf.mxu0
    %v1666 = vadd.f32 %v1637, %v1665
    %1667 = vdwg.mxu0
    %v1668 = vmul.f32 %v1663, 0.5
    %v1669 = vmul.f32 %v1666, 0.5
    %v1670 = vmul.f32 %v1663, 0.044715
    %v1671 = vmul.f32 %v1666, 0.044715
    %v1672 = vmul.f32 %v1670, %v1663
    %v1673 = vmul.f32 %v1671, %v1666
    %v1674 = vmul.f32 %v1672, %v1663
    %v1675 = vmul.f32 %v1673, %v1666
    %v1676 = vadd.f32 %v1663, %v1674
    %v1677 = vadd.f32 %v1666, %v1675
    %v1678 = vmul.f32 %v1676, 0.7978846
    %v1679 = vmul.f32 %v1677, 0.7978846
    %v1680 = vtanh.pop %v1678
    %v1681 = vtanh.pop %v1679
    %v1682 = vadd.f32 %v1680, 1.0
    %v1683 = vadd.f32 %v1681, 1.0
    %v1684 = vmul.f32 %v1668, %v1682
    %v1685 = vmul.f32 %v1669, %v1683
    %s1686 = scalar_lea.vmem %s18, 64
    %v1687 = vld [vmem:[%s1686] sm:$0xff]
    %v1688 = vld [vmem:[%s1686 + $0x8] sm:$0xff]
    %v1689 = vld [vmem:[%s1686 + $0x10] sm:$0xff]
    %v1690 = vld [vmem:[%s1686 + $0x18] sm:$0xff]
    %v1691 = vld [vmem:[%s1686 + $0x20] sm:$0xff]
    %v1692 = vld [vmem:[%s1686 + $0x28] sm:$0xff]
    %v1693 = vld [vmem:[%s1686 + $0x30] sm:$0xff]
    %v1694 = vld [vmem:[%s1686 + $0x38] sm:$0xff]
    %s1695 = scalar_lea.vmem %s19, 1
    %v1696 = vld [vmem:[%s1695] sm:$0x1]
    %v1698 = vperm.slane %v1696, 0
    %v1701 = vsel %vm885, %v1684, 0
    %v1704 = vsel %vm885, %v1685, 0
    %1706 = vmatpush.msra.mxu0 0.0
    %1707 = vmatpush.msra.mxu0 0.0
    %1708 = vmatpush.msra.mxu0 0.0
    %1709 = vmatpush.msra.mxu0 0.0
    %1710 = vmatpush.msra.mxu0 0.0
    %1711 = vmatpush.msra.mxu0 0.0
    %1712 = vmatpush.msra.mxu0 0.0
    %1713 = vmatpush.msra.mxu0 0.0
    %1714 = vmatpush.msra.mxu0 %v1694
    %1715 = vmatpush.msra.mxu0 %v1693
    %1716 = vmatpush.msra.mxu0 %v1692
    %1717 = vmatpush.msra.mxu0 %v1691
    %1718 = vmatpush.msra.mxu0 %v1690
    %1719 = vmatpush.msra.mxu0 %v1689
    %1720 = vmatpush.msra.mxu0 %v1688
    %1721 = vmatpush.msra.mxu0 %v1687
    %1722 = vmatmul.f32.gmra.mxu0 %v1701
    %v1723 = vpop.f32.mrf.mxu0
    %v1724 = vadd.f32 %v1698, %v1723
    %1725 = vmatmul.f32.gmra.mxu0 %v1704
    %v1726 = vpop.f32.mrf.mxu0
    %v1727 = vadd.f32 %v1698, %v1726
    %1728 = vdwg.mxu0
    %v1729 = vadd.f32 %v1627, %v1724
    %v1730 = vadd.f32 %v1628, %v1727
    %s1731 = scalar_lea.vmem %s20, 1
    %v1732 = vld [vmem:[%s1731] sm:$0x1]
    %s1733 = scalar_lea.vmem %s21, 1
    %v1734 = vld [vmem:[%s1733] sm:$0x1]
    %v1735 = vsel %vm88, %v1729, 0.0
    %1736 = vadd.xlane.f32.xlu0 %v1735
    %v1737 = vpop.xlane.xlu0 %1736
    %v1738 = vsel %vm88, %v1730, 0.0
    %1739 = vadd.xlane.f32.xlu0 %v1738
    %v1740 = vpop.xlane.xlu0 %1739
    %v1741 = vmul.f32 %v1737, %v101
    %v1742 = vmul.f32 %v1740, %v101
    %v1743 = vsub.f32 %v1729, %v1741
    %v1744 = vsub.f32 %v1730, %v1742
    %v1745 = vmul.f32 %v1743, %v1743
    %v1746 = vmul.f32 %v1744, %v1744
    %v1747 = vsel %vm88, %v1745, 0.0
    %1748 = vadd.xlane.f32.xlu0 %v1747
    %v1749 = vpop.xlane.xlu0 %1748
    %v1750 = vsel %vm88, %v1746, 0.0
    %1751 = vadd.xlane.f32.xlu0 %v1750
    %v1752 = vpop.xlane.xlu0 %1751
    %v1753 = vmul.f32 %v1749, %v101
    %v1754 = vmul.f32 %v1752, %v101
    %v1755 = vadd.f32 %v1753, 1e-12
    %v1756 = vadd.f32 %v1754, 1e-12
    %v1757 = vrsqrt.pop %v1755
    %v1758 = vmul.f32 %v1757, %v1755
    %v1759 = vmul.f32 %v1758, %v1757
    %v1760 = vmul.f32 0.5, %v1759
    %v1761 = vsub.f32 1.5, %v1760
    %v1762 = vmul.f32 %v1757, %v1761
    %vm1763 = vweird.f32 %v1755
    %vm1764 = vweird.f32 %v1757
    %vm1765 = vmor %vm1763, %vm1764
    %v1766 = vsel %vm1765, %v1757, %v1762
    %v1767 = vrsqrt.pop %v1756
    %v1768 = vmul.f32 %v1767, %v1756
    %v1769 = vmul.f32 %v1768, %v1767
    %v1770 = vmul.f32 0.5, %v1769
    %v1771 = vsub.f32 1.5, %v1770
    %v1772 = vmul.f32 %v1767, %v1771
    %vm1773 = vweird.f32 %v1756
    %vm1774 = vweird.f32 %v1767
    %vm1775 = vmor %vm1773, %vm1774
    %v1776 = vsel %vm1775, %v1767, %v1772
    %v1777 = vmul.f32 %v1743, %v1766
    %v1778 = vmul.f32 %v1744, %v1776
    %v1780 = vperm.slane %v1732, 0
    %v1782 = vmul.f32 %v1777, %v1780
    %v1783 = vmul.f32 %v1778, %v1780
    %v1785 = vperm.slane %v1734, 0
    %v1787 = vadd.f32 %v1782, %v1785
    %v1788 = vadd.f32 %v1783, %v1785
    %v1789 = vld [vmem:[%s3] sm:$0x3]
    %v1791 = vsel %vm300, %v1789, 0
    %1793 = vmatpush.msra.mxu0 0.0
    %1794 = vmatpush.msra.mxu0 0.0
    %1795 = vmatpush.msra.mxu0 0.0
    %1796 = vmatpush.msra.mxu0 0.0
    %1797 = vmatpush.msra.mxu0 0.0
    %1798 = vmatpush.msra.mxu0 0.0
    %1799 = vmatpush.msra.mxu0 0.0
    %1800 = vmatpush.msra.mxu0 0.0
    %1801 = vmatpush.msra.mxu0 0.0
    %1802 = vmatpush.msra.mxu0 0.0
    %1803 = vmatpush.msra.mxu0 0.0
    %1804 = vmatpush.msra.mxu0 0.0
    %1805 = vmatpush.msra.mxu0 0.0
    %1806 = vmatpush.msra.mxu0 0.0
    %1807 = vmatpush.msra.mxu0 %v1788
    %1808 = vmatpush.msra.mxu0 %v1787
    %1809 = vmatmul.f32.gmra.mxu0 %v1791
    %v1810 = vpop.f32.mrf.mxu0
    %v1811 = vadd.f32 0.0, %v1810
    %1812 = vdwg.mxu0
    %v1813 = vld [vmem:[%s22] sm:$0xff]
    %v1814 = vld [vmem:[%s22 + $0x8] sm:$0xff]
    %v1815 = vld [vmem:[%s22 + $0x10] sm:$0xff]
    %v1816 = vld [vmem:[%s22 + $0x18] sm:$0xff]
    %v1817 = vld [vmem:[%s23] sm:$0x1]
    %v1819 = vperm.slane %v1817, 0
    %v1822 = vsel %vm88, %v1811, 0
    %1824 = vmatpush.msra.mxu0 0.0
    %1825 = vmatpush.msra.mxu0 0.0
    %1826 = vmatpush.msra.mxu0 0.0
    %1827 = vmatpush.msra.mxu0 0.0
    %1828 = vmatpush.msra.mxu0 0.0
    %1829 = vmatpush.msra.mxu0 0.0
    %1830 = vmatpush.msra.mxu0 0.0
    %1831 = vmatpush.msra.mxu0 0.0
    %1832 = vmatpush.msra.mxu0 0.0
    %1833 = vmatpush.msra.mxu0 0.0
    %1834 = vmatpush.msra.mxu0 0.0
    %1835 = vmatpush.msra.mxu0 0.0
    %1836 = vmatpush.msra.mxu0 %v1816
    %1837 = vmatpush.msra.mxu0 %v1815
    %1838 = vmatpush.msra.mxu0 %v1814
    %1839 = vmatpush.msra.mxu0 %v1813
    %1840 = vmatmul.f32.gmra.mxu0 %v1822
    %v1841 = vpop.f32.mrf.mxu0
    %v1842 = vadd.f32 %v1819, %v1841
    %1843 = vdwg.mxu0
    %v1844 = vtanh.pop %v1842
    %v1845 = vld [vmem:[%s24] sm:$0xff]
    %v1846 = vld [vmem:[%s24 + $0x8] sm:$0xff]
    %v1847 = vld [vmem:[%s24 + $0x10] sm:$0xff]
    %v1848 = vld [vmem:[%s24 + $0x18] sm:$0xff]
    %v1849 = vld [vmem:[%s25] sm:$0x1]
    %v1851 = vperm.slane %v1849, 0
    %v1854 = vsel %vm88, %v1844, 0
    %1856 = vmatpush.msra.mxu0 0.0
    %1857 = vmatpush.msra.mxu0 0.0
    %1858 = vmatpush.msra.mxu0 0.0
    %1859 = vmatpush.msra.mxu0 0.0
    %1860 = vmatpush.msra.mxu0 0.0
    %1861 = vmatpush.msra.mxu0 0.0
    %1862 = vmatpush.msra.mxu0 0.0
    %1863 = vmatpush.msra.mxu0 0.0
    %1864 = vmatpush.msra.mxu0 0.0
    %1865 = vmatpush.msra.mxu0 0.0
    %1866 = vmatpush.msra.mxu0 0.0
    %1867 = vmatpush.msra.mxu0 0.0
    %1868 = vmatpush.msra.mxu0 %v1848
    %1869 = vmatpush.msra.mxu0 %v1847
    %1870 = vmatpush.msra.mxu0 %v1846
    %1871 = vmatpush.msra.mxu0 %v1845
    %1872 = vmatmul.f32.gmra.mxu0 %v1854
    %v1873 = vpop.f32.mrf.mxu0
    %v1874 = vadd.f32 %v1851, %v1873
    %1875 = vdwg.mxu0
    %vm1876 = vcmask 25600
    %v1877 = vsel %vm1876, %v1874, -inf
    %1878 = vmax.xlane.f32.xlu0 %v1877
    %v1879 = vpop.xlane.xlu0 %1878
    %v1880 = vsub.f32 %v1874, %v1879
    %v1881 = vmul.f32 %v1880, 1.442695
    %v1882 = vpow.pop %v1881
    %v1883 = vsel %vm1876, %v1882, 0.0
    %1884 = vadd.xlane.f32.xlu0 %v1883
    %v1885 = vpop.xlane.xlu0 %1884
    %v1886 = vrcp.pop %v1885
    %v1887 = vmul.f32 %v1885, %v1886
    %v1888 = vsub.f32 1.0, %v1887
    %v1889 = vmul.f32 %v1886, %v1888
    %v1890 = vadd.f32 %v1886, %v1889
    %vm1891 = vweird.f32 %v1885
    %vm1892 = vweird.f32 %v1886
    %vm1893 = vmor %vm1891, %vm1892
    %v1894 = vsel %vm1893, %v1886, %v1890
    %v1895 = vand.u32 2147483647, %v1885
    %vm1896 = vcmp.eq.f32.partialorder %v1895, 8.507059e+37
    %v1897 = vand.u32 %v1885, 2147483648
    %v1898 = vor.u32 1.1754944e-38, %v1897
    %v1899 = vsel %vm1896, %v1898, %v1894
    %v1900 = vmul.f32 %v1882, %v1899
    %1901 = vst.msk [vmem:[#allocation2] sm:$0x3] %vm1876, %v1900
    // Predicated region
    $region106: #{bert_model_forward.1} parent=1 // pred_check
      _
    $region107: #{bert_model_forward.1} parent=1 // pred_check_branch
      %1903 = sbr.rel (0) target = $region109
    $region108: #{bert_model_forward.1} parent=1 // pred_region
      %1905 = vsyncadd [#allocation3], 0
      %s1907 = sshll.u32 [#allocation2], 4
      %s1908 = int_to_ptr.vmem [resolvable:$true] %s1907
      %s1909 = sshll.u32 %s26, 4
      %s1910 = int_to_ptr.hbm [resolvable:$true] %s1909
      %1912 = dma.vmem_to_hbm [thread:$0]  %s1908, 32, %s1910, [#allocation3]
    $region109: #{bert_model_forward.1} parent=1 // pred_fallthru
      _
    // Predicated region
    $region110: #{bert_model_forward.1} parent=1 // pred_check
      _
    $region111: #{bert_model_forward.1} parent=1 // pred_check_branch
      %1914 = sbr.rel (0) target = $region113
    $region112: #{bert_model_forward.1} parent=1 // pred_region
      %1916 = dma.done [#allocation3], 32
    $region113: #{bert_model_forward.1} parent=1 // pred_fallthru
      _
    %1917 = vsyncpa [#allocation3], 1

</llo_original>
